<compile_context>
chip_gen: v7x
topology: tpu7x:2x2x1
jax: 0.10.0
libtpu: 0.0.40
codegen_flags: <defaults>
</compile_context>

<pallas_src>
import jax
import jax.numpy as jnp
from jax.experimental import pallas as pl
from jax.experimental.pallas import tpu as pltpu


# ----------------------------------------------------------------------------
# Tiling helpers
# ----------------------------------------------------------------------------
def _round_up(n, m):
    return ((n + m - 1) // m) * m


def _gram_tiling(N):
    """Pad N for lane-dense adjacency stores and pick the gram output tile.

    Padding goes UP to the tile boundary (cheap zero rows, sliced off later);
    the tile never degrades below 128 and never falls back to the full width.
    """
    if N <= 128:
        n_pad = 128
    else:
        n_pad = _round_up(N, 256)
    for t in (512, 256, 128):
        if n_pad % t == 0:
            return n_pad, t
    return n_pad, 128  # unreachable: n_pad is always a multiple of 128


def _mlp_row_tile(n_pad, max_tile=2048):
    """Large row tile for the fused MLP pass (feature dims are tiny)."""
    for t in (2048, 1024, 512, 256, 128):
        if t <= max_tile and n_pad % t == 0:
            return t
    return n_pad  # unreachable: n_pad is always a multiple of 128


# ----------------------------------------------------------------------------
# Pallas kernels
# ----------------------------------------------------------------------------
def _make_fused_mlp_kernel(n_gen, n_enc):
    """One kernel computing x_ = gen(noise), z = enc(x), z_ = enc(x_) per row tile.

    Hidden activations stay in VMEM/vregs for the whole tile; weights are tiny
    and VMEM-resident (constant index_map -> no re-fetch across grid steps).
    """

    def kernel(noise_ref, x_ref, *refs):
        gen_refs = refs[: 2 * n_gen]
        enc_refs = refs[2 * n_gen: 2 * (n_gen + n_enc)]
        xo_ref, z_ref, zg_ref = refs[2 * (n_gen + n_enc):]

        def mlp(h, prefs, n_layers):
            for li in range(n_layers):
                w = prefs[2 * li][...]
                b = prefs[2 * li + 1][...]          # (1, Dout), broadcasts
                h = jnp.dot(h, w, preferred_element_type=jnp.float32) + b
                if li < n_layers - 1:
                    h = jnp.maximum(h, 0.0)         # ReLU between layers
                # dropout(p) is identity at inference
            return h

        x_gen = mlp(noise_ref[...], gen_refs, n_gen)   # f32 accumulator output
        z = mlp(x_ref[...], enc_refs, n_enc)
        z_gen = mlp(x_gen, enc_refs, n_enc)

        xo_ref[...] = x_gen.astype(xo_ref.dtype)
        z_ref[...] = z.astype(z_ref.dtype)
        zg_ref[...] = z_gen.astype(zg_ref.dtype)

    return kernel


def _dual_sigmoid_gram_kernel(zr_ref, zc_ref, wr_ref, wc_ref, a_ref, a2_ref):
    """a[i,j] = sigmoid(z_rows @ z_cols^T); a_[i,j] = sigmoid(z__rows @ z__cols^T).

    Contraction on the last dim of both operands feeds the MXU directly.
    sigmoid(x) == 0.5 * tanh(0.5 * x) + 0.5 -> one EUP op per element.
    """

    def gram_sigmoid(r_ref, c_ref):
        s = jax.lax.dot_general(
            r_ref[...], c_ref[...],
            dimension_numbers=(((1,), (1,)), ((), ())),
            preferred_element_type=jnp.float32)
        return 0.5 * jnp.tanh(0.5 * s) + 0.5

    a_ref[...] = gram_sigmoid(zr_ref, zc_ref).astype(a_ref.dtype)
    a2_ref[...] = gram_sigmoid(wr_ref, wc_ref).astype(a2_ref.dtype)


# ----------------------------------------------------------------------------
# Wrappers around pallas_call
# ----------------------------------------------------------------------------
def fused_gaan_mlps(gen_params, enc_params, x, noise, *, tm):
    """Single pallas_call producing (x_, z, z_) from (noise, x)."""
    n_pad, in_dim = x.shape
    noise_dim = noise.shape[1]
    enc_out = enc_params[-1][0].shape[1]
    n_gen, n_enc = len(gen_params), len(enc_params)

    param_arrays = []
    param_specs = []
    for (w, b) in list(gen_params) + list(enc_params):
        param_arrays += [w, b]
        param_specs += [
            pl.BlockSpec(w.shape, lambda i: (0, 0)),   # full weight, resident
            pl.BlockSpec(b.shape, lambda i: (0, 0)),   # full bias,   resident
        ]

    out_shapes = (
        jax.ShapeDtypeStruct((n_pad, in_dim), x.dtype),    # x_
        jax.ShapeDtypeStruct((n_pad, enc_out), x.dtype),   # z
        jax.ShapeDtypeStruct((n_pad, enc_out), x.dtype),   # z_
    )
    out_specs = (
        pl.BlockSpec((tm, in_dim), lambda i: (i, 0)),
        pl.BlockSpec((tm, enc_out), lambda i: (i, 0)),
        pl.BlockSpec((tm, enc_out), lambda i: (i, 0)),
    )

    return pl.pallas_call(
        _make_fused_mlp_kernel(n_gen, n_enc),
        out_shape=out_shapes,
        grid=(n_pad // tm,),
        in_specs=[
            pl.BlockSpec((tm, noise_dim), lambda i: (i, 0)),   # noise row tile
            pl.BlockSpec((tm, in_dim), lambda i: (i, 0)),      # x row tile
            *param_specs,
        ],
        out_specs=out_specs,
        compiler_params=pltpu.CompilerParams(
            dimension_semantics=("parallel",),
            vmem_limit_bytes=32 * 1024 * 1024),
    )(noise, x, *param_arrays)


def dual_sigmoid_gram(z, z_, *, tm, tn, out_dtype):
    """(a, a_) = sigmoid(z @ z.T), sigmoid(z_ @ z_.T), fused in one grid step."""
    n_pad, hid = z.shape
    return pl.pallas_call(
        _dual_sigmoid_gram_kernel,
        out_shape=(jax.ShapeDtypeStruct((n_pad, n_pad), out_dtype),
                   jax.ShapeDtypeStruct((n_pad, n_pad), out_dtype)),
        grid=(n_pad // tm, n_pad // tn),
        in_specs=[
            pl.BlockSpec((tm, hid), lambda i, j: (i, 0)),   # z   row tile
            pl.BlockSpec((tn, hid), lambda i, j: (j, 0)),   # z   col tile
            pl.BlockSpec((tm, hid), lambda i, j: (i, 0)),   # z_  row tile
            pl.BlockSpec((tn, hid), lambda i, j: (j, 0)),   # z_  col tile
        ],
        out_specs=(pl.BlockSpec((tm, tn), lambda i, j: (i, j)),
                   pl.BlockSpec((tm, tn), lambda i, j: (i, j))),
        compiler_params=pltpu.CompilerParams(
            dimension_semantics=("parallel", "parallel"),
            vmem_limit_bytes=32 * 1024 * 1024),
    )(z, z, z_, z_)


# ----------------------------------------------------------------------------
# Parameter init (PyTorch nn.Linear default) + GAAN_Base forward
# ----------------------------------------------------------------------------
def init_linear_params(key, d_in, d_out):
    """PyTorch nn.Linear default init: U(-1/sqrt(d_in), 1/sqrt(d_in))."""
    kw, kb = jax.random.split(key)
    bound = 1.0 / jnp.sqrt(jnp.asarray(d_in, jnp.float32))
    w = jax.random.uniform(kw, (d_in, d_out), jnp.float32, -bound, bound)
    b = jax.random.uniform(kb, (1, d_out), jnp.float32, -bound, bound)
    return w, b


def init_mlp_params(key, in_dim, hid_dim, out_dim, num_layers):
    dims = [in_dim] + [hid_dim] * (num_layers - 1) + [out_dim]
    keys = jax.random.split(key, num_layers)
    return [init_linear_params(k, dims[i], dims[i + 1])
            for i, k in enumerate(keys)]


def gaan_base_forward(gen_params, enc_params, x, noise, edge_index,
                      *, adj_dtype=None):
    del edge_index  # unused in the reference forward
    N = x.shape[0]
    n_pad, t_gram = _gram_tiling(N)
    tm_mlp = _mlp_row_tile(n_pad)

    if adj_dtype is None:
        # The N^2 adjacency writeback dominates; bf16 halves that HBM traffic.
        # Keep the module dtype (f32) for small graphs / tight-tolerance demos.
        adj_dtype = jnp.bfloat16 if N > 2048 else x.dtype

    if n_pad != N:
        x = jnp.pad(x, ((0, n_pad - N), (0, 0)))
        noise = jnp.pad(noise, ((0, n_pad - N), (0, 0)))

    # One fused kernel: generator + both encoder passes.
    x_, z, z_ = fused_gaan_mlps(gen_params, enc_params, x, noise, tm=tm_mlp)

    # One kernel producing both sigmoid-gram adjacencies per (i, j) tile.
    a, a_ = dual_sigmoid_gram(z, z_, tm=t_gram, tn=t_gram, out_dtype=adj_dtype)

    if n_pad != N:
        x_ = x_[:N]
        a = a[:N, :N]
        a_ = a_[:N, :N]
    return x_, a, a_


# ----------------------------------------------------------------------------
# Demo / sanity check
# ----------------------------------------------------------------------------
if __name__ == "__main__":
    # Small, module-consistent shapes.
    N = 64            # number of nodes
    in_dim = 16
    noise_dim = 16
    hid_dim = 32
    generator_layers = 2
    encoder_layers = 2

    key = jax.random.PRNGKey(0)
    k_gen, k_enc, k_x, k_noise, k_edge = jax.random.split(key, 5)

    gen_params = init_mlp_params(k_gen, noise_dim, hid_dim, in_dim,
                                 generator_layers)
    enc_params = init_mlp_params(k_enc, in_dim, hid_dim, hid_dim,
                                 encoder_layers)

    x = jax.random.normal(k_x, (N, in_dim), jnp.float32)
    noise = jax.random.normal(k_noise, (N, noise_dim), jnp.float32)
    edge_index = jax.random.randint(k_edge, (2, 128), 0, N, jnp.int32)

    x_, a, a_ = gaan_base_forward(gen_params, enc_params, x, noise, edge_index)
    jax.block_until_ready((x_, a, a_))

    # Reference check in plain JAX.
    def ref_mlp(params, h):
        for li, (w, b) in enumerate(params):
            h = h @ w + b
            if li < len(params) - 1:
                h = jnp.maximum(h, 0.0)
        return h

    x_ref = ref_mlp(gen_params, noise)
    z_ref = ref_mlp(enc_params, x)
    zg_ref = ref_mlp(enc_params, x_ref)
    a_ref = jax.nn.sigmoid(z_ref @ z_ref.T)
    ag_ref = jax.nn.sigmoid(zg_ref @ zg_ref.T)

    assert jnp.allclose(x_, x_ref, atol=1e-5, rtol=1e-5)
    assert jnp.allclose(a, a_ref, atol=1e-5, rtol=1e-5)
    assert jnp.allclose(a_, ag_ref, atol=1e-5, rtol=1e-5)
    assert x_.shape == (N, in_dim) and a.shape == (N, N) and a_.shape == (N, N)

    print("KERNEL_OK")
</pallas_src>

<mosaic_0001>
module attributes {stable_mosaic.version = 11 : i64} {
  func.func @kernel(%arg0: i32, %arg1: memref<128x16xf32, #tpu.memory_space<vmem>>, %arg2: memref<128x16xf32, #tpu.memory_space<vmem>>, %arg3: memref<16x32xf32, #tpu.memory_space<vmem>>, %arg4: memref<1x32xf32, #tpu.memory_space<vmem>>, %arg5: memref<32x16xf32, #tpu.memory_space<vmem>>, %arg6: memref<1x16xf32, #tpu.memory_space<vmem>>, %arg7: memref<16x32xf32, #tpu.memory_space<vmem>>, %arg8: memref<1x32xf32, #tpu.memory_space<vmem>>, %arg9: memref<32x32xf32, #tpu.memory_space<vmem>>, %arg10: memref<1x32xf32, #tpu.memory_space<vmem>>, %arg11: memref<128x16xf32, #tpu.memory_space<vmem>>, %arg12: memref<128x32xf32, #tpu.memory_space<vmem>>, %arg13: memref<128x32xf32, #tpu.memory_space<vmem>>) attributes {dimension_semantics = [#tpu.dimension_semantics<parallel>], iteration_bounds = array<i64: 1>, scalar_prefetch = 0 : i64, scratch_operands = 0 : i64, tpu.core_type = #tpu.core_type<tc>, window_params = [{transform_indices = @transform_0, window_bounds = array<i64: 128, 16>}, {transform_indices = @transform_1, window_bounds = array<i64: 128, 16>}, {pipeline_mode = #tpu.pipeline_mode<synchronous>, transform_indices = @transform_2, window_bounds = array<i64: 16, 32>}, {pipeline_mode = #tpu.pipeline_mode<synchronous>, transform_indices = @transform_3, window_bounds = array<i64: 1, 32>}, {pipeline_mode = #tpu.pipeline_mode<synchronous>, transform_indices = @transform_4, window_bounds = array<i64: 32, 16>}, {pipeline_mode = #tpu.pipeline_mode<synchronous>, transform_indices = @transform_5, window_bounds = array<i64: 1, 16>}, {pipeline_mode = #tpu.pipeline_mode<synchronous>, transform_indices = @transform_6, window_bounds = array<i64: 16, 32>}, {pipeline_mode = #tpu.pipeline_mode<synchronous>, transform_indices = @transform_7, window_bounds = array<i64: 1, 32>}, {pipeline_mode = #tpu.pipeline_mode<synchronous>, transform_indices = @transform_8, window_bounds = array<i64: 32, 32>}, {pipeline_mode = #tpu.pipeline_mode<synchronous>, transform_indices = @transform_9, window_bounds = array<i64: 1, 32>}, {transform_indices = @transform_10, window_bounds = array<i64: 128, 16>}, {transform_indices = @transform_11, window_bounds = array<i64: 128, 32>}, {transform_indices = @transform_12, window_bounds = array<i64: 128, 32>}]} {
    %c0 = arith.constant 0 : index
    %c0_0 = arith.constant 0 : index
    %0 = vector.load %arg1[%c0, %c0_0] : memref<128x16xf32, #tpu.memory_space<vmem>>, vector<128x16xf32>
    %c0_1 = arith.constant 0 : index
    %c0_2 = arith.constant 0 : index
    %1 = vector.load %arg3[%c0_1, %c0_2] : memref<16x32xf32, #tpu.memory_space<vmem>>, vector<16x32xf32>
    %c0_3 = arith.constant 0 : index
    %c0_4 = arith.constant 0 : index
    %2 = vector.load %arg4[%c0_3, %c0_4] : memref<1x32xf32, #tpu.memory_space<vmem>>, vector<1x32xf32>
    %cst = arith.constant dense<0.000000e+00> : vector<128x32xf32>
    %3 = tpu.matmul %0, %1, %cst {dimension_numbers = #tpu.dot_dimension_numbers<[1], [0], [0], [1], [0, 0, 1, 1], [], []>} : vector<128x16xf32>, vector<16x32xf32>, vector<128x32xf32> -> vector<128x32xf32>
    %4 = vector.broadcast %2 : vector<1x32xf32> to vector<128x32xf32>
    %5 = arith.addf %3, %4 : vector<128x32xf32>
    %cst_5 = arith.constant 0.000000e+00 : f32
    %6 = vector.broadcast %cst_5 : f32 to vector<128x32xf32>
    %7 = arith.maximumf %5, %6 : vector<128x32xf32>
    %c0_6 = arith.constant 0 : index
    %c0_7 = arith.constant 0 : index
    %8 = vector.load %arg5[%c0_6, %c0_7] : memref<32x16xf32, #tpu.memory_space<vmem>>, vector<32x16xf32>
    %c0_8 = arith.constant 0 : index
    %c0_9 = arith.constant 0 : index
    %9 = vector.load %arg6[%c0_8, %c0_9] : memref<1x16xf32, #tpu.memory_space<vmem>>, vector<1x16xf32>
    %cst_10 = arith.constant dense<0.000000e+00> : vector<128x16xf32>
    %10 = tpu.matmul %7, %8, %cst_10 {dimension_numbers = #tpu.dot_dimension_numbers<[1], [0], [0], [1], [0, 0, 1, 1], [], []>} : vector<128x32xf32>, vector<32x16xf32>, vector<128x16xf32> -> vector<128x16xf32>
    %11 = vector.broadcast %9 : vector<1x16xf32> to vector<128x16xf32>
    %12 = arith.addf %10, %11 : vector<128x16xf32>
    %c0_11 = arith.constant 0 : index
    %c0_12 = arith.constant 0 : index
    %13 = vector.load %arg2[%c0_11, %c0_12] : memref<128x16xf32, #tpu.memory_space<vmem>>, vector<128x16xf32>
    %c0_13 = arith.constant 0 : index
    %c0_14 = arith.constant 0 : index
    %14 = vector.load %arg7[%c0_13, %c0_14] : memref<16x32xf32, #tpu.memory_space<vmem>>, vector<16x32xf32>
    %c0_15 = arith.constant 0 : index
    %c0_16 = arith.constant 0 : index
    %15 = vector.load %arg8[%c0_15, %c0_16] : memref<1x32xf32, #tpu.memory_space<vmem>>, vector<1x32xf32>
    %cst_17 = arith.constant dense<0.000000e+00> : vector<128x32xf32>
    %16 = tpu.matmul %13, %14, %cst_17 {dimension_numbers = #tpu.dot_dimension_numbers<[1], [0], [0], [1], [0, 0, 1, 1], [], []>} : vector<128x16xf32>, vector<16x32xf32>, vector<128x32xf32> -> vector<128x32xf32>
    %17 = vector.broadcast %15 : vector<1x32xf32> to vector<128x32xf32>
    %18 = arith.addf %16, %17 : vector<128x32xf32>
    %cst_18 = arith.constant 0.000000e+00 : f32
    %19 = vector.broadcast %cst_18 : f32 to vector<128x32xf32>
    %20 = arith.maximumf %18, %19 : vector<128x32xf32>
    %c0_19 = arith.constant 0 : index
    %c0_20 = arith.constant 0 : index
    %21 = vector.load %arg9[%c0_19, %c0_20] : memref<32x32xf32, #tpu.memory_space<vmem>>, vector<32x32xf32>
    %c0_21 = arith.constant 0 : index
    %c0_22 = arith.constant 0 : index
    %22 = vector.load %arg10[%c0_21, %c0_22] : memref<1x32xf32, #tpu.memory_space<vmem>>, vector<1x32xf32>
    %cst_23 = arith.constant dense<0.000000e+00> : vector<128x32xf32>
    %23 = tpu.matmul %20, %21, %cst_23 {dimension_numbers = #tpu.dot_dimension_numbers<[1], [0], [0], [1], [0, 0, 1, 1], [], []>} : vector<128x32xf32>, vector<32x32xf32>, vector<128x32xf32> -> vector<128x32xf32>
    %24 = vector.broadcast %22 : vector<1x32xf32> to vector<128x32xf32>
    %25 = arith.addf %23, %24 : vector<128x32xf32>
    %c0_24 = arith.constant 0 : index
    %c0_25 = arith.constant 0 : index
    %26 = vector.load %arg7[%c0_24, %c0_25] : memref<16x32xf32, #tpu.memory_space<vmem>>, vector<16x32xf32>
    %c0_26 = arith.constant 0 : index
    %c0_27 = arith.constant 0 : index
    %27 = vector.load %arg8[%c0_26, %c0_27] : memref<1x32xf32, #tpu.memory_space<vmem>>, vector<1x32xf32>
    %cst_28 = arith.constant dense<0.000000e+00> : vector<128x32xf32>
    %28 = tpu.matmul %12, %26, %cst_28 {dimension_numbers = #tpu.dot_dimension_numbers<[1], [0], [0], [1], [0, 0, 1, 1], [], []>} : vector<128x16xf32>, vector<16x32xf32>, vector<128x32xf32> -> vector<128x32xf32>
    %29 = vector.broadcast %27 : vector<1x32xf32> to vector<128x32xf32>
    %30 = arith.addf %28, %29 : vector<128x32xf32>
    %cst_29 = arith.constant 0.000000e+00 : f32
    %31 = vector.broadcast %cst_29 : f32 to vector<128x32xf32>
    %32 = arith.maximumf %30, %31 : vector<128x32xf32>
    %c0_30 = arith.constant 0 : index
    %c0_31 = arith.constant 0 : index
    %33 = vector.load %arg9[%c0_30, %c0_31] : memref<32x32xf32, #tpu.memory_space<vmem>>, vector<32x32xf32>
    %c0_32 = arith.constant 0 : index
    %c0_33 = arith.constant 0 : index
    %34 = vector.load %arg10[%c0_32, %c0_33] : memref<1x32xf32, #tpu.memory_space<vmem>>, vector<1x32xf32>
    %cst_34 = arith.constant dense<0.000000e+00> : vector<128x32xf32>
    %35 = tpu.matmul %32, %33, %cst_34 {dimension_numbers = #tpu.dot_dimension_numbers<[1], [0], [0], [1], [0, 0, 1, 1], [], []>} : vector<128x32xf32>, vector<32x32xf32>, vector<128x32xf32> -> vector<128x32xf32>
    %36 = vector.broadcast %34 : vector<1x32xf32> to vector<128x32xf32>
    %37 = arith.addf %35, %36 : vector<128x32xf32>
    %c0_35 = arith.constant 0 : index
    %c0_36 = arith.constant 0 : index
    %38 = vector.load %arg11[%c0_35, %c0_36] : memref<128x16xf32, #tpu.memory_space<vmem>>, vector<128x16xf32>
    tpu.vector_store %arg11[%c0_35, %c0_36], %12 {strides = array<i32>} : memref<128x16xf32, #tpu.memory_space<vmem>>, vector<128x16xf32>,
    %c0_37 = arith.constant 0 : index
    %c0_38 = arith.constant 0 : index
    %39 = vector.load %arg12[%c0_37, %c0_38] : memref<128x32xf32, #tpu.memory_space<vmem>>, vector<128x32xf32>
    tpu.vector_store %arg12[%c0_37, %c0_38], %25 {strides = array<i32>} : memref<128x32xf32, #tpu.memory_space<vmem>>, vector<128x32xf32>,
    %c0_39 = arith.constant 0 : index
    %c0_40 = arith.constant 0 : index
    %40 = vector.load %arg13[%c0_39, %c0_40] : memref<128x32xf32, #tpu.memory_space<vmem>>, vector<128x32xf32>
    tpu.vector_store %arg13[%c0_39, %c0_40], %37 {strides = array<i32>} : memref<128x32xf32, #tpu.memory_space<vmem>>, vector<128x32xf32>,
    return
  }
  func.func @transform_0(%arg0: i32) -> (i32, i32) {
    %c0_i32 = arith.constant 0 : i32
    %c0_i32_0 = arith.constant 0 : i32
    return %arg0, %c0_i32 : i32, i32
  }
  func.func @transform_1(%arg0: i32) -> (i32, i32) {
    %c0_i32 = arith.constant 0 : i32
    %c0_i32_0 = arith.constant 0 : i32
    return %arg0, %c0_i32 : i32, i32
  }
  func.func @transform_2(%arg0: i32) -> (i32, i32) {
    %c0_i32 = arith.constant 0 : i32
    %c0_i32_0 = arith.constant 0 : i32
    %c0_i32_1 = arith.constant 0 : i32
    return %c0_i32, %c0_i32_0 : i32, i32
  }
  func.func @transform_3(%arg0: i32) -> (i32, i32) {
    %c0_i32 = arith.constant 0 : i32
    %c0_i32_0 = arith.constant 0 : i32
    %c0_i32_1 = arith.constant 0 : i32
    return %c0_i32, %c0_i32_0 : i32, i32
  }
  func.func @transform_4(%arg0: i32) -> (i32, i32) {
    %c0_i32 = arith.constant 0 : i32
    %c0_i32_0 = arith.constant 0 : i32
    %c0_i32_1 = arith.constant 0 : i32
    return %c0_i32, %c0_i32_0 : i32, i32
  }
  func.func @transform_5(%arg0: i32) -> (i32, i32) {
    %c0_i32 = arith.constant 0 : i32
    %c0_i32_0 = arith.constant 0 : i32
    %c0_i32_1 = arith.constant 0 : i32
    return %c0_i32, %c0_i32_0 : i32, i32
  }
  func.func @transform_6(%arg0: i32) -> (i32, i32) {
    %c0_i32 = arith.constant 0 : i32
    %c0_i32_0 = arith.constant 0 : i32
    %c0_i32_1 = arith.constant 0 : i32
    return %c0_i32, %c0_i32_0 : i32, i32
  }
  func.func @transform_7(%arg0: i32) -> (i32, i32) {
    %c0_i32 = arith.constant 0 : i32
    %c0_i32_0 = arith.constant 0 : i32
    %c0_i32_1 = arith.constant 0 : i32
    return %c0_i32, %c0_i32_0 : i32, i32
  }
  func.func @transform_8(%arg0: i32) -> (i32, i32) {
    %c0_i32 = arith.constant 0 : i32
    %c0_i32_0 = arith.constant 0 : i32
    %c0_i32_1 = arith.constant 0 : i32
    return %c0_i32, %c0_i32_0 : i32, i32
  }
  func.func @transform_9(%arg0: i32) -> (i32, i32) {
    %c0_i32 = arith.constant 0 : i32
    %c0_i32_0 = arith.constant 0 : i32
    %c0_i32_1 = arith.constant 0 : i32
    return %c0_i32, %c0_i32_0 : i32, i32
  }
  func.func @transform_10(%arg0: i32) -> (i32, i32) {
    %c0_i32 = arith.constant 0 : i32
    %c0_i32_0 = arith.constant 0 : i32
    return %arg0, %c0_i32 : i32, i32
  }
  func.func @transform_11(%arg0: i32) -> (i32, i32) {
    %c0_i32 = arith.constant 0 : i32
    %c0_i32_0 = arith.constant 0 : i32
    return %arg0, %c0_i32 : i32, i32
  }
  func.func @transform_12(%arg0: i32) -> (i32, i32) {
    %c0_i32 = arith.constant 0 : i32
    %c0_i32_0 = arith.constant 0 : i32
    return %arg0, %c0_i32 : i32, i32
  }
}

</mosaic_0001>

<llo_original>
// kernel: tpu_custom_call.1
$region0: #{tpu_custom_call.1}
  #allocation0 [shape = 'u32[]', space=smem, size = 0x4, offset = 0x4, fixed_abs, tag = 'smem constant byte address 0x4 - core index']
  #allocation1 [shape = 'u32[144,128]{1,0:T(1,128)}', space=vmem, size = 0x12000, scoped, tag = 'internal scratch']
  %s0 = inlined_call_operand.vmem [shape: f32[128,16], index: 0, kind: input, shape index: {}]
  %s1 = inlined_call_operand.vmem [shape: f32[128,16], index: 1, kind: input, shape index: {}]
  %s2 = inlined_call_operand.vmem [shape: f32[16,32], index: 2, kind: input, shape index: {}]
  %s3 = inlined_call_operand.vmem [shape: f32[1,32], index: 3, kind: input, shape index: {}]
  %s4 = inlined_call_operand.vmem [shape: f32[32,16], index: 4, kind: input, shape index: {}]
  %s5 = inlined_call_operand.vmem [shape: f32[1,16], index: 5, kind: input, shape index: {}]
  %s6 = inlined_call_operand.vmem [shape: f32[16,32], index: 6, kind: input, shape index: {}]
  %s7 = inlined_call_operand.vmem [shape: f32[1,32], index: 7, kind: input, shape index: {}]
  %s8 = inlined_call_operand.vmem [shape: f32[32,32], index: 8, kind: input, shape index: {}]
  %s9 = inlined_call_operand.vmem [shape: f32[1,32], index: 9, kind: input, shape index: {}]
  %s10 = inlined_call_operand.vmem [shape: f32[128,16], index: 10, kind: output, shape index: {0}]
  %s11 = inlined_call_operand.vmem [shape: f32[128,32], index: 11, kind: output, shape index: {1}]
  %s12 = inlined_call_operand.vmem [shape: f32[128,32], index: 12, kind: output, shape index: {2}]
  %13 = xla_tuple %s10, %s11, %s12
  %s14 = sld [smem:[#allocation0]]
  $region66: #{tpu_custom_call.1} parent=0
    _
  %s16 = ssub.s32 1, %s14
  %s17 = scalar_select 0, %s16, %s14
  // Predicated region
  $region2: #{tpu_custom_call.1} parent=0 // pred_check
    _
  $region3: #{tpu_custom_call.1} parent=0 // pred_check_branch
    %19 = sbr.rel (0) target = $region5
  $region4: #{tpu_custom_call.1} parent=0 // pred_region
    _
  $region5: #{tpu_custom_call.1} parent=0 // pred_fallthru
    _
  // Predicated region
  $region6: #{tpu_custom_call.1} parent=0 // pred_check
    _
  $region7: #{tpu_custom_call.1} parent=0 // pred_check_branch
    %21 = sbr.rel (0) target = $region9
  $region8: #{tpu_custom_call.1} parent=0 // pred_region
    _
  $region9: #{tpu_custom_call.1} parent=0 // pred_fallthru
    _
  // Predicated region
  $region10: #{tpu_custom_call.1} parent=0 // pred_check
    _
  $region11: #{tpu_custom_call.1} parent=0 // pred_check_branch
    %23 = sbr.rel (0) target = $region13
  $region12: #{tpu_custom_call.1} parent=0 // pred_region
    _
  $region13: #{tpu_custom_call.1} parent=0 // pred_fallthru
    _
  // Predicated region
  $region14: #{tpu_custom_call.1} parent=0 // pred_check
    _
  $region15: #{tpu_custom_call.1} parent=0 // pred_check_branch
    %25 = sbr.rel (0) target = $region17
  $region16: #{tpu_custom_call.1} parent=0 // pred_region
    _
  $region17: #{tpu_custom_call.1} parent=0 // pred_fallthru
    _
  // Predicated region
  $region18: #{tpu_custom_call.1} parent=0 // pred_check
    _
  $region19: #{tpu_custom_call.1} parent=0 // pred_check_branch
    %27 = sbr.rel (0) target = $region21
  $region20: #{tpu_custom_call.1} parent=0 // pred_region
    _
  $region21: #{tpu_custom_call.1} parent=0 // pred_fallthru
    _
  // Predicated region
  $region22: #{tpu_custom_call.1} parent=0 // pred_check
    _
  $region23: #{tpu_custom_call.1} parent=0 // pred_check_branch
    %29 = sbr.rel (0) target = $region25
  $region24: #{tpu_custom_call.1} parent=0 // pred_region
    _
  $region25: #{tpu_custom_call.1} parent=0 // pred_fallthru
    _
  // Predicated region
  $region26: #{tpu_custom_call.1} parent=0 // pred_check
    _
  $region27: #{tpu_custom_call.1} parent=0 // pred_check_branch
    %31 = sbr.rel (0) target = $region29
  $region28: #{tpu_custom_call.1} parent=0 // pred_region
    _
  $region29: #{tpu_custom_call.1} parent=0 // pred_fallthru
    _
  // Predicated region
  $region30: #{tpu_custom_call.1} parent=0 // pred_check
    _
  $region31: #{tpu_custom_call.1} parent=0 // pred_check_branch
    %33 = sbr.rel (0) target = $region33
  $region32: #{tpu_custom_call.1} parent=0 // pred_region
    _
  $region33: #{tpu_custom_call.1} parent=0 // pred_fallthru
    _
  // Predicated region
  $region34: #{tpu_custom_call.1} parent=0 // pred_check
    _
  $region35: #{tpu_custom_call.1} parent=0 // pred_check_branch
    %35 = sbr.rel (0) target = $region37
  $region36: #{tpu_custom_call.1} parent=0 // pred_region
    _
  $region37: #{tpu_custom_call.1} parent=0 // pred_fallthru
    _
  // Predicated region
  $region38: #{tpu_custom_call.1} parent=0 // pred_check
    _
  $region39: #{tpu_custom_call.1} parent=0 // pred_check_branch
    %37 = sbr.rel (0) target = $region41
  $region40: #{tpu_custom_call.1} parent=0 // pred_region
    _
  $region41: #{tpu_custom_call.1} parent=0 // pred_fallthru
    _
  %v38 = vld [vmem:[%s0] sm:$0xff]
  %v39 = vld [vmem:[%s0 + $0x8] sm:$0xff]
  %v40 = vld [vmem:[%s0 + $0x10] sm:$0xff]
  %v41 = vld [vmem:[%s0 + $0x18] sm:$0xff]
  %v42 = vld [vmem:[%s0 + $0x20] sm:$0xff]
  %v43 = vld [vmem:[%s0 + $0x28] sm:$0xff]
  %v44 = vld [vmem:[%s0 + $0x30] sm:$0xff]
  %v45 = vld [vmem:[%s0 + $0x38] sm:$0xff]
  %v46 = vld [vmem:[%s0 + $0x40] sm:$0xff]
  %v47 = vld [vmem:[%s0 + $0x48] sm:$0xff]
  %v48 = vld [vmem:[%s0 + $0x50] sm:$0xff]
  %v49 = vld [vmem:[%s0 + $0x58] sm:$0xff]
  %v50 = vld [vmem:[%s0 + $0x60] sm:$0xff]
  %v51 = vld [vmem:[%s0 + $0x68] sm:$0xff]
  %v52 = vld [vmem:[%s0 + $0x70] sm:$0xff]
  %v53 = vld [vmem:[%s0 + $0x78] sm:$0xff]
  %v54 = vld [vmem:[%s2] sm:$0xff]
  %v55 = vld [vmem:[%s2 + $0x8] sm:$0xff]
  %v56 = vld [vmem:[%s3] sm:$0x1]
  %v58 = vlaneseq
  %v59 = vshrl.u32 %v58, 7
  %v60 = vsub.s32 0, %v59
  %v61 = vrot.slane %v56, %v60
  %vm63 = vcmask 130048
  %v65 = vsel %vm63, %v38, 0
  %v68 = vsel %vm63, %v39, 0
  %v71 = vsel %vm63, %v40, 0
  %v74 = vsel %vm63, %v41, 0
  %v77 = vsel %vm63, %v42, 0
  %v80 = vsel %vm63, %v43, 0
  %v83 = vsel %vm63, %v44, 0
  %v86 = vsel %vm63, %v45, 0
  %v89 = vsel %vm63, %v46, 0
  %v92 = vsel %vm63, %v47, 0
  %v95 = vsel %vm63, %v48, 0
  %v98 = vsel %vm63, %v49, 0
  %v101 = vsel %vm63, %v50, 0
  %v104 = vsel %vm63, %v51, 0
  %v107 = vsel %vm63, %v52, 0
  %v110 = vsel %vm63, %v53, 0
  %112 = vmatprep.subr.mxu0 0.0
  %113 = vmatpush1.msra.mxu0 %v54
  %114 = vmatprep.subr.mxu0 0.0
  %115 = vmatpush1.msra.mxu0 %v55
  %116 = vmatprep.subr.mxu0 0.0
  %117 = vmatpush1.msra.mxu0 0.0
  %118 = vmatprep.subr.mxu0 0.0
  %119 = vmatpush1.msra.mxu0 0.0
  %120 = vmatprep.subr.mxu0 0.0
  %121 = vmatpush1.msra.mxu0 0.0
  %122 = vmatprep.subr.mxu0 0.0
  %123 = vmatpush1.msra.mxu0 0.0
  %124 = vmatprep.subr.mxu0 0.0
  %125 = vmatpush1.msra.mxu0 0.0
  %126 = vmatprep.subr.mxu0 0.0
  %127 = vmatpush1.msra.mxu0 0.0
  %128 = vmatprep.subr.mxu0 0.0
  %129 = vmatpush1.msra.mxu0 0.0
  %130 = vmatprep.subr.mxu0 0.0
  %131 = vmatpush1.msra.mxu0 0.0
  %132 = vmatprep.subr.mxu0 0.0
  %133 = vmatpush1.msra.mxu0 0.0
  %134 = vmatprep.subr.mxu0 0.0
  %135 = vmatpush1.msra.mxu0 0.0
  %136 = vmatprep.subr.mxu0 0.0
  %137 = vmatpush1.msra.mxu0 0.0
  %138 = vmatprep.subr.mxu0 0.0
  %139 = vmatpush1.msra.mxu0 0.0
  %140 = vmatprep.subr.mxu0 0.0
  %141 = vmatpush1.msra.mxu0 0.0
  %142 = vmatprep.subr.mxu0 0.0
  %143 = vmatpush1.msra.mxu0 0.0
  %144 = vmatprep.subr.mxu0 0.0
  %145 = vmatpush1.msra.mxu0 0.0
  %146 = vmatprep.subr.mxu0 0.0
  %147 = vmatpush1.msra.mxu0 0.0
  %148 = vmatprep.subr.mxu0 0.0
  %149 = vmatpush1.msra.mxu0 0.0
  %150 = vmatprep.subr.mxu0 0.0
  %151 = vmatpush1.msra.mxu0 0.0
  %152 = vmatprep.subr.mxu0 0.0
  %153 = vmatpush1.msra.mxu0 0.0
  %154 = vmatprep.subr.mxu0 0.0
  %155 = vmatpush1.msra.mxu0 0.0
  %156 = vmatprep.subr.mxu0 0.0
  %157 = vmatpush1.msra.mxu0 0.0
  %158 = vmatprep.subr.mxu0 0.0
  %159 = vmatpush1.msra.mxu0 0.0
  %160 = vmatprep.subr.mxu0 0.0
  %161 = vmatpush1.msra.mxu0 0.0
  %162 = vmatprep.subr.mxu0 0.0
  %163 = vmatpush1.msra.mxu0 0.0
  %164 = vmatprep.subr.mxu0 0.0
  %165 = vmatpush1.msra.mxu0 0.0
  %166 = vmatprep.subr.mxu0 0.0
  %167 = vmatpush1.msra.mxu0 0.0
  %168 = vmatprep.subr.mxu0 0.0
  %169 = vmatpush1.msra.mxu0 0.0
  %170 = vmatprep.subr.mxu0 0.0
  %171 = vmatpush1.msra.mxu0 0.0
  %172 = vmatprep.subr.mxu0 0.0
  %173 = vmatpush1.msra.mxu0 0.0
  %174 = vmatprep.subr.mxu0 0.0
  %175 = vmatpush1.msra.mxu0 0.0
  %176 = vmatprep.mubr.f32.mxu0 0.0
  %177 = vmatmul.mubr.f32.gmra.mrb[0].mxu0 %v65
  %v178 = vpop.f32.mrb[0].mxu0
  %v179 = vadd.f32 %v61, %v178
  %v180 = vpop.f32.mrb[0].mxu0
  %181 = vmatprep.mubr.f32.mxu0 0.0
  %182 = vmatmul.mubr.f32.gmra.mrb[0].mxu0 %v68
  %v183 = vpop.f32.mrb[0].mxu0
  %v184 = vadd.f32 %v61, %v183
  %v185 = vpop.f32.mrb[0].mxu0
  %186 = vmatprep.mubr.f32.mxu0 0.0
  %187 = vmatmul.mubr.f32.gmra.mrb[0].mxu0 %v71
  %v188 = vpop.f32.mrb[0].mxu0
  %v189 = vadd.f32 %v61, %v188
  %v190 = vpop.f32.mrb[0].mxu0
  %191 = vmatprep.mubr.f32.mxu0 0.0
  %192 = vmatmul.mubr.f32.gmra.mrb[0].mxu0 %v74
  %v193 = vpop.f32.mrb[0].mxu0
  %v194 = vadd.f32 %v61, %v193
  %v195 = vpop.f32.mrb[0].mxu0
  %196 = vmatprep.mubr.f32.mxu0 0.0
  %197 = vmatmul.mubr.f32.gmra.mrb[0].mxu0 %v77
  %v198 = vpop.f32.mrb[0].mxu0
  %v199 = vadd.f32 %v61, %v198
  %v200 = vpop.f32.mrb[0].mxu0
  %201 = vmatprep.mubr.f32.mxu0 0.0
  %202 = vmatmul.mubr.f32.gmra.mrb[0].mxu0 %v80
  %v203 = vpop.f32.mrb[0].mxu0
  %v204 = vadd.f32 %v61, %v203
  %v205 = vpop.f32.mrb[0].mxu0
  %206 = vmatprep.mubr.f32.mxu0 0.0
  %207 = vmatmul.mubr.f32.gmra.mrb[0].mxu0 %v83
  %v208 = vpop.f32.mrb[0].mxu0
  %v209 = vadd.f32 %v61, %v208
  %v210 = vpop.f32.mrb[0].mxu0
  %211 = vmatprep.mubr.f32.mxu0 0.0
  %212 = vmatmul.mubr.f32.gmra.mrb[0].mxu0 %v86
  %v213 = vpop.f32.mrb[0].mxu0
  %v214 = vadd.f32 %v61, %v213
  %v215 = vpop.f32.mrb[0].mxu0
  %216 = vmatprep.mubr.f32.mxu0 0.0
  %217 = vmatmul.mubr.f32.gmra.mrb[0].mxu0 %v89
  %v218 = vpop.f32.mrb[0].mxu0
  %v219 = vadd.f32 %v61, %v218
  %v220 = vpop.f32.mrb[0].mxu0
  %221 = vmatprep.mubr.f32.mxu0 0.0
  %222 = vmatmul.mubr.f32.gmra.mrb[0].mxu0 %v92
  %v223 = vpop.f32.mrb[0].mxu0
  %v224 = vadd.f32 %v61, %v223
  %v225 = vpop.f32.mrb[0].mxu0
  %226 = vmatprep.mubr.f32.mxu0 0.0
  %227 = vmatmul.mubr.f32.gmra.mrb[0].mxu0 %v95
  %v228 = vpop.f32.mrb[0].mxu0
  %v229 = vadd.f32 %v61, %v228
  %v230 = vpop.f32.mrb[0].mxu0
  %231 = vmatprep.mubr.f32.mxu0 0.0
  %232 = vmatmul.mubr.f32.gmra.mrb[0].mxu0 %v98
  %v233 = vpop.f32.mrb[0].mxu0
  %v234 = vadd.f32 %v61, %v233
  %v235 = vpop.f32.mrb[0].mxu0
  %236 = vmatprep.mubr.f32.mxu0 0.0
  %237 = vmatmul.mubr.f32.gmra.mrb[0].mxu0 %v101
  %v238 = vpop.f32.mrb[0].mxu0
  %v239 = vadd.f32 %v61, %v238
  %v240 = vpop.f32.mrb[0].mxu0
  %241 = vmatprep.mubr.f32.mxu0 0.0
  %242 = vmatmul.mubr.f32.gmra.mrb[0].mxu0 %v104
  %v243 = vpop.f32.mrb[0].mxu0
  %v244 = vadd.f32 %v61, %v243
  %v245 = vpop.f32.mrb[0].mxu0
  %246 = vmatprep.mubr.f32.mxu0 0.0
  %247 = vmatmul.mubr.f32.gmra.mrb[0].mxu0 %v107
  %v248 = vpop.f32.mrb[0].mxu0
  %v249 = vadd.f32 %v61, %v248
  %v250 = vpop.f32.mrb[0].mxu0
  %251 = vmatprep.mubr.f32.mxu0 0.0
  %252 = vmatmul.mubr.f32.gmra.mrb[0].mxu0 %v110
  %v253 = vpop.f32.mrb[0].mxu0
  %v254 = vadd.f32 %v61, %v253
  %v255 = vpop.f32.mrb[0].mxu0
  %256 = vdwg.mxu0
  %v257 = vmax.f32 %v179, 0.0
  %v258 = vmax.f32 %v184, 0.0
  %v259 = vmax.f32 %v189, 0.0
  %v260 = vmax.f32 %v194, 0.0
  %v261 = vmax.f32 %v199, 0.0
  %v262 = vmax.f32 %v204, 0.0
  %v263 = vmax.f32 %v209, 0.0
  %v264 = vmax.f32 %v214, 0.0
  %v265 = vmax.f32 %v219, 0.0
  %v266 = vmax.f32 %v224, 0.0
  %v267 = vmax.f32 %v229, 0.0
  %v268 = vmax.f32 %v234, 0.0
  %v269 = vmax.f32 %v239, 0.0
  %v270 = vmax.f32 %v244, 0.0
  %v271 = vmax.f32 %v249, 0.0
  %v272 = vmax.f32 %v254, 0.0
  %v273 = vld [vmem:[%s4] sm:$0xff]
  %v274 = vld [vmem:[%s4 + $0x8] sm:$0xff]
  %v275 = vld [vmem:[%s4 + $0x10] sm:$0xff]
  %v276 = vld [vmem:[%s4 + $0x18] sm:$0xff]
  %v277 = vld [vmem:[%s5] sm:$0x1]
  %v279 = vlaneseq
  %v280 = vshrl.u32 %v279, 7
  %v281 = vsub.s32 0, %v280
  %v282 = vrot.slane %v277, %v281
  %vm284 = vcmask 261120
  %v286 = vsel %vm284, %v257, 0
  %v289 = vsel %vm284, %v258, 0
  %v292 = vsel %vm284, %v259, 0
  %v295 = vsel %vm284, %v260, 0
  %v298 = vsel %vm284, %v261, 0
  %v301 = vsel %vm284, %v262, 0
  %v304 = vsel %vm284, %v263, 0
  %v307 = vsel %vm284, %v264, 0
  %v310 = vsel %vm284, %v265, 0
  %v313 = vsel %vm284, %v266, 0
  %v316 = vsel %vm284, %v267, 0
  %v319 = vsel %vm284, %v268, 0
  %v322 = vsel %vm284, %v269, 0
  %v325 = vsel %vm284, %v270, 0
  %v328 = vsel %vm284, %v271, 0
  %v331 = vsel %vm284, %v272, 0
  %333 = vmatprep.subr.mxu0 0.0
  %334 = vmatpush1.msra.mxu0 %v273
  %335 = vmatprep.subr.mxu0 0.0
  %336 = vmatpush1.msra.mxu0 %v274
  %337 = vmatprep.subr.mxu0 0.0
  %338 = vmatpush1.msra.mxu0 %v275
  %339 = vmatprep.subr.mxu0 0.0
  %340 = vmatpush1.msra.mxu0 %v276
  %341 = vmatprep.subr.mxu0 0.0
  %342 = vmatpush1.msra.mxu0 0.0
  %343 = vmatprep.subr.mxu0 0.0
  %344 = vmatpush1.msra.mxu0 0.0
  %345 = vmatprep.subr.mxu0 0.0
  %346 = vmatpush1.msra.mxu0 0.0
  %347 = vmatprep.subr.mxu0 0.0
  %348 = vmatpush1.msra.mxu0 0.0
  %349 = vmatprep.subr.mxu0 0.0
  %350 = vmatpush1.msra.mxu0 0.0
  %351 = vmatprep.subr.mxu0 0.0
  %352 = vmatpush1.msra.mxu0 0.0
  %353 = vmatprep.subr.mxu0 0.0
  %354 = vmatpush1.msra.mxu0 0.0
  %355 = vmatprep.subr.mxu0 0.0
  %356 = vmatpush1.msra.mxu0 0.0
  %357 = vmatprep.subr.mxu0 0.0
  %358 = vmatpush1.msra.mxu0 0.0
  %359 = vmatprep.subr.mxu0 0.0
  %360 = vmatpush1.msra.mxu0 0.0
  %361 = vmatprep.subr.mxu0 0.0
  %362 = vmatpush1.msra.mxu0 0.0
  %363 = vmatprep.subr.mxu0 0.0
  %364 = vmatpush1.msra.mxu0 0.0
  %365 = vmatprep.subr.mxu0 0.0
  %366 = vmatpush1.msra.mxu0 0.0
  %367 = vmatprep.subr.mxu0 0.0
  %368 = vmatpush1.msra.mxu0 0.0
  %369 = vmatprep.subr.mxu0 0.0
  %370 = vmatpush1.msra.mxu0 0.0
  %371 = vmatprep.subr.mxu0 0.0
  %372 = vmatpush1.msra.mxu0 0.0
  %373 = vmatprep.subr.mxu0 0.0
  %374 = vmatpush1.msra.mxu0 0.0
  %375 = vmatprep.subr.mxu0 0.0
  %376 = vmatpush1.msra.mxu0 0.0
  %377 = vmatprep.subr.mxu0 0.0
  %378 = vmatpush1.msra.mxu0 0.0
  %379 = vmatprep.subr.mxu0 0.0
  %380 = vmatpush1.msra.mxu0 0.0
  %381 = vmatprep.subr.mxu0 0.0
  %382 = vmatpush1.msra.mxu0 0.0
  %383 = vmatprep.subr.mxu0 0.0
  %384 = vmatpush1.msra.mxu0 0.0
  %385 = vmatprep.subr.mxu0 0.0
  %386 = vmatpush1.msra.mxu0 0.0
  %387 = vmatprep.subr.mxu0 0.0
  %388 = vmatpush1.msra.mxu0 0.0
  %389 = vmatprep.subr.mxu0 0.0
  %390 = vmatpush1.msra.mxu0 0.0
  %391 = vmatprep.subr.mxu0 0.0
  %392 = vmatpush1.msra.mxu0 0.0
  %393 = vmatprep.subr.mxu0 0.0
  %394 = vmatpush1.msra.mxu0 0.0
  %395 = vmatprep.subr.mxu0 0.0
  %396 = vmatpush1.msra.mxu0 0.0
  %397 = vmatprep.mubr.f32.mxu0 0.0
  %398 = vmatmul.mubr.f32.gmra.mrb[0].mxu0 %v286
  %v399 = vpop.f32.mrb[0].mxu0
  %v400 = vadd.f32 %v282, %v399
  %v401 = vpop.f32.mrb[0].mxu0
  %402 = vmatprep.mubr.f32.mxu0 0.0
  %403 = vmatmul.mubr.f32.gmra.mrb[0].mxu0 %v289
  %v404 = vpop.f32.mrb[0].mxu0
  %v405 = vadd.f32 %v282, %v404
  %v406 = vpop.f32.mrb[0].mxu0
  %407 = vmatprep.mubr.f32.mxu0 0.0
  %408 = vmatmul.mubr.f32.gmra.mrb[0].mxu0 %v292
  %v409 = vpop.f32.mrb[0].mxu0
  %v410 = vadd.f32 %v282, %v409
  %v411 = vpop.f32.mrb[0].mxu0
  %412 = vmatprep.mubr.f32.mxu0 0.0
  %413 = vmatmul.mubr.f32.gmra.mrb[0].mxu0 %v295
  %v414 = vpop.f32.mrb[0].mxu0
  %v415 = vadd.f32 %v282, %v414
  %v416 = vpop.f32.mrb[0].mxu0
  %417 = vmatprep.mubr.f32.mxu0 0.0
  %418 = vmatmul.mubr.f32.gmra.mrb[0].mxu0 %v298
  %v419 = vpop.f32.mrb[0].mxu0
  %v420 = vadd.f32 %v282, %v419
  %v421 = vpop.f32.mrb[0].mxu0
  %422 = vmatprep.mubr.f32.mxu0 0.0
  %423 = vmatmul.mubr.f32.gmra.mrb[0].mxu0 %v301
  %v424 = vpop.f32.mrb[0].mxu0
  %v425 = vadd.f32 %v282, %v424
  %v426 = vpop.f32.mrb[0].mxu0
  %427 = vmatprep.mubr.f32.mxu0 0.0
  %428 = vmatmul.mubr.f32.gmra.mrb[0].mxu0 %v304
  %v429 = vpop.f32.mrb[0].mxu0
  %v430 = vadd.f32 %v282, %v429
  %v431 = vpop.f32.mrb[0].mxu0
  %432 = vmatprep.mubr.f32.mxu0 0.0
  %433 = vmatmul.mubr.f32.gmra.mrb[0].mxu0 %v307
  %v434 = vpop.f32.mrb[0].mxu0
  %v435 = vadd.f32 %v282, %v434
  %v436 = vpop.f32.mrb[0].mxu0
  %437 = vmatprep.mubr.f32.mxu0 0.0
  %438 = vmatmul.mubr.f32.gmra.mrb[0].mxu0 %v310
  %v439 = vpop.f32.mrb[0].mxu0
  %v440 = vadd.f32 %v282, %v439
  %v441 = vpop.f32.mrb[0].mxu0
  %442 = vmatprep.mubr.f32.mxu0 0.0
  %443 = vmatmul.mubr.f32.gmra.mrb[0].mxu0 %v313
  %v444 = vpop.f32.mrb[0].mxu0
  %v445 = vadd.f32 %v282, %v444
  %v446 = vpop.f32.mrb[0].mxu0
  %447 = vmatprep.mubr.f32.mxu0 0.0
  %448 = vmatmul.mubr.f32.gmra.mrb[0].mxu0 %v316
  %v449 = vpop.f32.mrb[0].mxu0
  %v450 = vadd.f32 %v282, %v449
  %v451 = vpop.f32.mrb[0].mxu0
  %452 = vmatprep.mubr.f32.mxu0 0.0
  %453 = vmatmul.mubr.f32.gmra.mrb[0].mxu0 %v319
  %v454 = vpop.f32.mrb[0].mxu0
  %v455 = vadd.f32 %v282, %v454
  %v456 = vpop.f32.mrb[0].mxu0
  %457 = vmatprep.mubr.f32.mxu0 0.0
  %458 = vmatmul.mubr.f32.gmra.mrb[0].mxu0 %v322
  %v459 = vpop.f32.mrb[0].mxu0
  %v460 = vadd.f32 %v282, %v459
  %v461 = vpop.f32.mrb[0].mxu0
  %462 = vmatprep.mubr.f32.mxu0 0.0
  %463 = vmatmul.mubr.f32.gmra.mrb[0].mxu0 %v325
  %v464 = vpop.f32.mrb[0].mxu0
  %v465 = vadd.f32 %v282, %v464
  %v466 = vpop.f32.mrb[0].mxu0
  %467 = vmatprep.mubr.f32.mxu0 0.0
  %468 = vmatmul.mubr.f32.gmra.mrb[0].mxu0 %v328
  %v469 = vpop.f32.mrb[0].mxu0
  %v470 = vadd.f32 %v282, %v469
  %v471 = vpop.f32.mrb[0].mxu0
  %472 = vmatprep.mubr.f32.mxu0 0.0
  %473 = vmatmul.mubr.f32.gmra.mrb[0].mxu0 %v331
  %v474 = vpop.f32.mrb[0].mxu0
  %v475 = vadd.f32 %v282, %v474
  %v476 = vpop.f32.mrb[0].mxu0
  %477 = vdwg.mxu0
  %v478 = vld [vmem:[%s1] sm:$0xff]
  %v479 = vld [vmem:[%s1 + $0x8] sm:$0xff]
  %v480 = vld [vmem:[%s1 + $0x10] sm:$0xff]
  %v481 = vld [vmem:[%s1 + $0x18] sm:$0xff]
  %v482 = vld [vmem:[%s1 + $0x20] sm:$0xff]
  %v483 = vld [vmem:[%s1 + $0x28] sm:$0xff]
  %v484 = vld [vmem:[%s1 + $0x30] sm:$0xff]
  %v485 = vld [vmem:[%s1 + $0x38] sm:$0xff]
  %v486 = vld [vmem:[%s1 + $0x40] sm:$0xff]
  %v487 = vld [vmem:[%s1 + $0x48] sm:$0xff]
  %v488 = vld [vmem:[%s1 + $0x50] sm:$0xff]
  %v489 = vld [vmem:[%s1 + $0x58] sm:$0xff]
  %v490 = vld [vmem:[%s1 + $0x60] sm:$0xff]
  %v491 = vld [vmem:[%s1 + $0x68] sm:$0xff]
  %v492 = vld [vmem:[%s1 + $0x70] sm:$0xff]
  %v493 = vld [vmem:[%s1 + $0x78] sm:$0xff]
  %v494 = vld [vmem:[%s6] sm:$0xff]
  %v495 = vld [vmem:[%s6 + $0x8] sm:$0xff]
  %v496 = vld [vmem:[%s7] sm:$0x1]
  %v498 = vlaneseq
  %v499 = vshrl.u32 %v498, 7
  %v500 = vsub.s32 0, %v499
  %v501 = vrot.slane %v496, %v500
  %v504 = vsel %vm63, %v478, 0
  %v507 = vsel %vm63, %v479, 0
  %v510 = vsel %vm63, %v480, 0
  %v513 = vsel %vm63, %v481, 0
  %v516 = vsel %vm63, %v482, 0
  %v519 = vsel %vm63, %v483, 0
  %v522 = vsel %vm63, %v484, 0
  %v525 = vsel %vm63, %v485, 0
  %v528 = vsel %vm63, %v486, 0
  %v531 = vsel %vm63, %v487, 0
  %v534 = vsel %vm63, %v488, 0
  %v537 = vsel %vm63, %v489, 0
  %v540 = vsel %vm63, %v490, 0
  %v543 = vsel %vm63, %v491, 0
  %v546 = vsel %vm63, %v492, 0
  %v549 = vsel %vm63, %v493, 0
  %551 = vmatprep.subr.mxu0 0.0
  %552 = vmatpush1.msra.mxu0 %v494
  %553 = vmatprep.subr.mxu0 0.0
  %554 = vmatpush1.msra.mxu0 %v495
  %555 = vmatprep.subr.mxu0 0.0
  %556 = vmatpush1.msra.mxu0 0.0
  %557 = vmatprep.subr.mxu0 0.0
  %558 = vmatpush1.msra.mxu0 0.0
  %559 = vmatprep.subr.mxu0 0.0
  %560 = vmatpush1.msra.mxu0 0.0
  %561 = vmatprep.subr.mxu0 0.0
  %562 = vmatpush1.msra.mxu0 0.0
  %563 = vmatprep.subr.mxu0 0.0
  %564 = vmatpush1.msra.mxu0 0.0
  %565 = vmatprep.subr.mxu0 0.0
  %566 = vmatpush1.msra.mxu0 0.0
  %567 = vmatprep.subr.mxu0 0.0
  %568 = vmatpush1.msra.mxu0 0.0
  %569 = vmatprep.subr.mxu0 0.0
  %570 = vmatpush1.msra.mxu0 0.0
  %571 = vmatprep.subr.mxu0 0.0
  %572 = vmatpush1.msra.mxu0 0.0
  %573 = vmatprep.subr.mxu0 0.0
  %574 = vmatpush1.msra.mxu0 0.0
  %575 = vmatprep.subr.mxu0 0.0
  %576 = vmatpush1.msra.mxu0 0.0
  %577 = vmatprep.subr.mxu0 0.0
  %578 = vmatpush1.msra.mxu0 0.0
  %579 = vmatprep.subr.mxu0 0.0
  %580 = vmatpush1.msra.mxu0 0.0
  %581 = vmatprep.subr.mxu0 0.0
  %582 = vmatpush1.msra.mxu0 0.0
  %583 = vmatprep.subr.mxu0 0.0
  %584 = vmatpush1.msra.mxu0 0.0
  %585 = vmatprep.subr.mxu0 0.0
  %586 = vmatpush1.msra.mxu0 0.0
  %587 = vmatprep.subr.mxu0 0.0
  %588 = vmatpush1.msra.mxu0 0.0
  %589 = vmatprep.subr.mxu0 0.0
  %590 = vmatpush1.msra.mxu0 0.0
  %591 = vmatprep.subr.mxu0 0.0
  %592 = vmatpush1.msra.mxu0 0.0
  %593 = vmatprep.subr.mxu0 0.0
  %594 = vmatpush1.msra.mxu0 0.0
  %595 = vmatprep.subr.mxu0 0.0
  %596 = vmatpush1.msra.mxu0 0.0
  %597 = vmatprep.subr.mxu0 0.0
  %598 = vmatpush1.msra.mxu0 0.0
  %599 = vmatprep.subr.mxu0 0.0
  %600 = vmatpush1.msra.mxu0 0.0
  %601 = vmatprep.subr.mxu0 0.0
  %602 = vmatpush1.msra.mxu0 0.0
  %603 = vmatprep.subr.mxu0 0.0
  %604 = vmatpush1.msra.mxu0 0.0
  %605 = vmatprep.subr.mxu0 0.0
  %606 = vmatpush1.msra.mxu0 0.0
  %607 = vmatprep.subr.mxu0 0.0
  %608 = vmatpush1.msra.mxu0 0.0
  %609 = vmatprep.subr.mxu0 0.0
  %610 = vmatpush1.msra.mxu0 0.0
  %611 = vmatprep.subr.mxu0 0.0
  %612 = vmatpush1.msra.mxu0 0.0
  %613 = vmatprep.subr.mxu0 0.0
  %614 = vmatpush1.msra.mxu0 0.0
  %615 = vmatprep.mubr.f32.mxu0 0.0
  %616 = vmatmul.mubr.f32.gmra.mrb[0].mxu0 %v504
  %v617 = vpop.f32.mrb[0].mxu0
  %v618 = vadd.f32 %v501, %v617
  %v619 = vpop.f32.mrb[0].mxu0
  %620 = vmatprep.mubr.f32.mxu0 0.0
  %621 = vmatmul.mubr.f32.gmra.mrb[0].mxu0 %v507
  %v622 = vpop.f32.mrb[0].mxu0
  %v623 = vadd.f32 %v501, %v622
  %v624 = vpop.f32.mrb[0].mxu0
  %625 = vmatprep.mubr.f32.mxu0 0.0
  %626 = vmatmul.mubr.f32.gmra.mrb[0].mxu0 %v510
  %v627 = vpop.f32.mrb[0].mxu0
  %v628 = vadd.f32 %v501, %v627
  %v629 = vpop.f32.mrb[0].mxu0
  %630 = vmatprep.mubr.f32.mxu0 0.0
  %631 = vmatmul.mubr.f32.gmra.mrb[0].mxu0 %v513
  %v632 = vpop.f32.mrb[0].mxu0
  %v633 = vadd.f32 %v501, %v632
  %v634 = vpop.f32.mrb[0].mxu0
  %635 = vmatprep.mubr.f32.mxu0 0.0
  %636 = vmatmul.mubr.f32.gmra.mrb[0].mxu0 %v516
  %v637 = vpop.f32.mrb[0].mxu0
  %v638 = vadd.f32 %v501, %v637
  %v639 = vpop.f32.mrb[0].mxu0
  %640 = vmatprep.mubr.f32.mxu0 0.0
  %641 = vmatmul.mubr.f32.gmra.mrb[0].mxu0 %v519
  %v642 = vpop.f32.mrb[0].mxu0
  %v643 = vadd.f32 %v501, %v642
  %v644 = vpop.f32.mrb[0].mxu0
  %645 = vmatprep.mubr.f32.mxu0 0.0
  %646 = vmatmul.mubr.f32.gmra.mrb[0].mxu0 %v522
  %v647 = vpop.f32.mrb[0].mxu0
  %v648 = vadd.f32 %v501, %v647
  %v649 = vpop.f32.mrb[0].mxu0
  %650 = vmatprep.mubr.f32.mxu0 0.0
  %651 = vmatmul.mubr.f32.gmra.mrb[0].mxu0 %v525
  %v652 = vpop.f32.mrb[0].mxu0
  %v653 = vadd.f32 %v501, %v652
  %v654 = vpop.f32.mrb[0].mxu0
  %655 = vmatprep.mubr.f32.mxu0 0.0
  %656 = vmatmul.mubr.f32.gmra.mrb[0].mxu0 %v528
  %v657 = vpop.f32.mrb[0].mxu0
  %v658 = vadd.f32 %v501, %v657
  %v659 = vpop.f32.mrb[0].mxu0
  %660 = vmatprep.mubr.f32.mxu0 0.0
  %661 = vmatmul.mubr.f32.gmra.mrb[0].mxu0 %v531
  %v662 = vpop.f32.mrb[0].mxu0
  %v663 = vadd.f32 %v501, %v662
  %v664 = vpop.f32.mrb[0].mxu0
  %665 = vmatprep.mubr.f32.mxu0 0.0
  %666 = vmatmul.mubr.f32.gmra.mrb[0].mxu0 %v534
  %v667 = vpop.f32.mrb[0].mxu0
  %v668 = vadd.f32 %v501, %v667
  %v669 = vpop.f32.mrb[0].mxu0
  %670 = vmatprep.mubr.f32.mxu0 0.0
  %671 = vmatmul.mubr.f32.gmra.mrb[0].mxu0 %v537
  %v672 = vpop.f32.mrb[0].mxu0
  %v673 = vadd.f32 %v501, %v672
  %v674 = vpop.f32.mrb[0].mxu0
  %675 = vmatprep.mubr.f32.mxu0 0.0
  %676 = vmatmul.mubr.f32.gmra.mrb[0].mxu0 %v540
  %v677 = vpop.f32.mrb[0].mxu0
  %v678 = vadd.f32 %v501, %v677
  %v679 = vpop.f32.mrb[0].mxu0
  %680 = vmatprep.mubr.f32.mxu0 0.0
  %681 = vmatmul.mubr.f32.gmra.mrb[0].mxu0 %v543
  %v682 = vpop.f32.mrb[0].mxu0
  %v683 = vadd.f32 %v501, %v682
  %v684 = vpop.f32.mrb[0].mxu0
  %685 = vmatprep.mubr.f32.mxu0 0.0
  %686 = vmatmul.mubr.f32.gmra.mrb[0].mxu0 %v546
  %v687 = vpop.f32.mrb[0].mxu0
  %v688 = vadd.f32 %v501, %v687
  %v689 = vpop.f32.mrb[0].mxu0
  %690 = vmatprep.mubr.f32.mxu0 0.0
  %691 = vmatmul.mubr.f32.gmra.mrb[0].mxu0 %v549
  %v692 = vpop.f32.mrb[0].mxu0
  %v693 = vadd.f32 %v501, %v692
  %v694 = vpop.f32.mrb[0].mxu0
  %695 = vdwg.mxu0
  %v696 = vmax.f32 %v618, 0.0
  %v697 = vmax.f32 %v623, 0.0
  %v698 = vmax.f32 %v628, 0.0
  %v699 = vmax.f32 %v633, 0.0
  %v700 = vmax.f32 %v638, 0.0
  %v701 = vmax.f32 %v643, 0.0
  %v702 = vmax.f32 %v648, 0.0
  %v703 = vmax.f32 %v653, 0.0
  %v704 = vmax.f32 %v658, 0.0
  %v705 = vmax.f32 %v663, 0.0
  %v706 = vmax.f32 %v668, 0.0
  %v707 = vmax.f32 %v673, 0.0
  %v708 = vmax.f32 %v678, 0.0
  %v709 = vmax.f32 %v683, 0.0
  %v710 = vmax.f32 %v688, 0.0
  %v711 = vmax.f32 %v693, 0.0
  %v712 = vld [vmem:[%s8] sm:$0xff]
  %v713 = vld [vmem:[%s8 + $0x8] sm:$0xff]
  %v714 = vld [vmem:[%s8 + $0x10] sm:$0xff]
  %v715 = vld [vmem:[%s8 + $0x18] sm:$0xff]
  %v716 = vld [vmem:[%s9] sm:$0x1]
  %v718 = vlaneseq
  %v719 = vshrl.u32 %v718, 7
  %v720 = vsub.s32 0, %v719
  %v721 = vrot.slane %v716, %v720
  %v724 = vsel %vm284, %v696, 0
  %v727 = vsel %vm284, %v697, 0
  %v730 = vsel %vm284, %v698, 0
  %v733 = vsel %vm284, %v699, 0
  %v736 = vsel %vm284, %v700, 0
  %v739 = vsel %vm284, %v701, 0
  %v742 = vsel %vm284, %v702, 0
  %v745 = vsel %vm284, %v703, 0
  %v748 = vsel %vm284, %v704, 0
  %v751 = vsel %vm284, %v705, 0
  %v754 = vsel %vm284, %v706, 0
  %v757 = vsel %vm284, %v707, 0
  %v760 = vsel %vm284, %v708, 0
  %v763 = vsel %vm284, %v709, 0
  %v766 = vsel %vm284, %v710, 0
  %v769 = vsel %vm284, %v711, 0
  %771 = vmatprep.subr.mxu0 0.0
  %772 = vmatpush1.msra.mxu0 %v712
  %773 = vmatprep.subr.mxu0 0.0
  %774 = vmatpush1.msra.mxu0 %v713
  %775 = vmatprep.subr.mxu0 0.0
  %776 = vmatpush1.msra.mxu0 %v714
  %777 = vmatprep.subr.mxu0 0.0
  %778 = vmatpush1.msra.mxu0 %v715
  %779 = vmatprep.subr.mxu0 0.0
  %780 = vmatpush1.msra.mxu0 0.0
  %781 = vmatprep.subr.mxu0 0.0
  %782 = vmatpush1.msra.mxu0 0.0
  %783 = vmatprep.subr.mxu0 0.0
  %784 = vmatpush1.msra.mxu0 0.0
  %785 = vmatprep.subr.mxu0 0.0
  %786 = vmatpush1.msra.mxu0 0.0
  %787 = vmatprep.subr.mxu0 0.0
  %788 = vmatpush1.msra.mxu0 0.0
  %789 = vmatprep.subr.mxu0 0.0
  %790 = vmatpush1.msra.mxu0 0.0
  %791 = vmatprep.subr.mxu0 0.0
  %792 = vmatpush1.msra.mxu0 0.0
  %793 = vmatprep.subr.mxu0 0.0
  %794 = vmatpush1.msra.mxu0 0.0
  %795 = vmatprep.subr.mxu0 0.0
  %796 = vmatpush1.msra.mxu0 0.0
  %797 = vmatprep.subr.mxu0 0.0
  %798 = vmatpush1.msra.mxu0 0.0
  %799 = vmatprep.subr.mxu0 0.0
  %800 = vmatpush1.msra.mxu0 0.0
  %801 = vmatprep.subr.mxu0 0.0
  %802 = vmatpush1.msra.mxu0 0.0
  %803 = vmatprep.subr.mxu0 0.0
  %804 = vmatpush1.msra.mxu0 0.0
  %805 = vmatprep.subr.mxu0 0.0
  %806 = vmatpush1.msra.mxu0 0.0
  %807 = vmatprep.subr.mxu0 0.0
  %808 = vmatpush1.msra.mxu0 0.0
  %809 = vmatprep.subr.mxu0 0.0
  %810 = vmatpush1.msra.mxu0 0.0
  %811 = vmatprep.subr.mxu0 0.0
  %812 = vmatpush1.msra.mxu0 0.0
  %813 = vmatprep.subr.mxu0 0.0
  %814 = vmatpush1.msra.mxu0 0.0
  %815 = vmatprep.subr.mxu0 0.0
  %816 = vmatpush1.msra.mxu0 0.0
  %817 = vmatprep.subr.mxu0 0.0
  %818 = vmatpush1.msra.mxu0 0.0
  %819 = vmatprep.subr.mxu0 0.0
  %820 = vmatpush1.msra.mxu0 0.0
  %821 = vmatprep.subr.mxu0 0.0
  %822 = vmatpush1.msra.mxu0 0.0
  %823 = vmatprep.subr.mxu0 0.0
  %824 = vmatpush1.msra.mxu0 0.0
  %825 = vmatprep.subr.mxu0 0.0
  %826 = vmatpush1.msra.mxu0 0.0
  %827 = vmatprep.subr.mxu0 0.0
  %828 = vmatpush1.msra.mxu0 0.0
  %829 = vmatprep.subr.mxu0 0.0
  %830 = vmatpush1.msra.mxu0 0.0
  %831 = vmatprep.subr.mxu0 0.0
  %832 = vmatpush1.msra.mxu0 0.0
  %833 = vmatprep.subr.mxu0 0.0
  %834 = vmatpush1.msra.mxu0 0.0
  %835 = vmatprep.mubr.f32.mxu0 0.0
  %836 = vmatmul.mubr.f32.gmra.mrb[0].mxu0 %v724
  %v837 = vpop.f32.mrb[0].mxu0
  %v838 = vadd.f32 %v721, %v837
  %v839 = vpop.f32.mrb[0].mxu0
  %840 = vmatprep.mubr.f32.mxu0 0.0
  %841 = vmatmul.mubr.f32.gmra.mrb[0].mxu0 %v727
  %v842 = vpop.f32.mrb[0].mxu0
  %v843 = vadd.f32 %v721, %v842
  %v844 = vpop.f32.mrb[0].mxu0
  %845 = vmatprep.mubr.f32.mxu0 0.0
  %846 = vmatmul.mubr.f32.gmra.mrb[0].mxu0 %v730
  %v847 = vpop.f32.mrb[0].mxu0
  %v848 = vadd.f32 %v721, %v847
  %v849 = vpop.f32.mrb[0].mxu0
  %850 = vmatprep.mubr.f32.mxu0 0.0
  %851 = vmatmul.mubr.f32.gmra.mrb[0].mxu0 %v733
  %v852 = vpop.f32.mrb[0].mxu0
  %v853 = vadd.f32 %v721, %v852
  %v854 = vpop.f32.mrb[0].mxu0
  %855 = vmatprep.mubr.f32.mxu0 0.0
  %856 = vmatmul.mubr.f32.gmra.mrb[0].mxu0 %v736
  %v857 = vpop.f32.mrb[0].mxu0
  %v858 = vadd.f32 %v721, %v857
  %v859 = vpop.f32.mrb[0].mxu0
  %860 = vmatprep.mubr.f32.mxu0 0.0
  %861 = vmatmul.mubr.f32.gmra.mrb[0].mxu0 %v739
  %v862 = vpop.f32.mrb[0].mxu0
  %v863 = vadd.f32 %v721, %v862
  %v864 = vpop.f32.mrb[0].mxu0
  %865 = vmatprep.mubr.f32.mxu0 0.0
  %866 = vmatmul.mubr.f32.gmra.mrb[0].mxu0 %v742
  %v867 = vpop.f32.mrb[0].mxu0
  %v868 = vadd.f32 %v721, %v867
  %v869 = vpop.f32.mrb[0].mxu0
  %870 = vmatprep.mubr.f32.mxu0 0.0
  %871 = vmatmul.mubr.f32.gmra.mrb[0].mxu0 %v745
  %v872 = vpop.f32.mrb[0].mxu0
  %v873 = vadd.f32 %v721, %v872
  %v874 = vpop.f32.mrb[0].mxu0
  %875 = vmatprep.mubr.f32.mxu0 0.0
  %876 = vmatmul.mubr.f32.gmra.mrb[0].mxu0 %v748
  %v877 = vpop.f32.mrb[0].mxu0
  %v878 = vadd.f32 %v721, %v877
  %v879 = vpop.f32.mrb[0].mxu0
  %880 = vmatprep.mubr.f32.mxu0 0.0
  %881 = vmatmul.mubr.f32.gmra.mrb[0].mxu0 %v751
  %v882 = vpop.f32.mrb[0].mxu0
  %v883 = vadd.f32 %v721, %v882
  %v884 = vpop.f32.mrb[0].mxu0
  %885 = vmatprep.mubr.f32.mxu0 0.0
  %886 = vmatmul.mubr.f32.gmra.mrb[0].mxu0 %v754
  %v887 = vpop.f32.mrb[0].mxu0
  %v888 = vadd.f32 %v721, %v887
  %v889 = vpop.f32.mrb[0].mxu0
  %890 = vmatprep.mubr.f32.mxu0 0.0
  %891 = vmatmul.mubr.f32.gmra.mrb[0].mxu0 %v757
  %v892 = vpop.f32.mrb[0].mxu0
  %v893 = vadd.f32 %v721, %v892
  %v894 = vpop.f32.mrb[0].mxu0
  %895 = vmatprep.mubr.f32.mxu0 0.0
  %896 = vmatmul.mubr.f32.gmra.mrb[0].mxu0 %v760
  %v897 = vpop.f32.mrb[0].mxu0
  %v898 = vadd.f32 %v721, %v897
  %v899 = vpop.f32.mrb[0].mxu0
  %900 = vmatprep.mubr.f32.mxu0 0.0
  %901 = vmatmul.mubr.f32.gmra.mrb[0].mxu0 %v763
  %v902 = vpop.f32.mrb[0].mxu0
  %v903 = vadd.f32 %v721, %v902
  %v904 = vpop.f32.mrb[0].mxu0
  %905 = vmatprep.mubr.f32.mxu0 0.0
  %906 = vmatmul.mubr.f32.gmra.mrb[0].mxu0 %v766
  %v907 = vpop.f32.mrb[0].mxu0
  %v908 = vadd.f32 %v721, %v907
  %v909 = vpop.f32.mrb[0].mxu0
  %910 = vmatprep.mubr.f32.mxu0 0.0
  %911 = vmatmul.mubr.f32.gmra.mrb[0].mxu0 %v769
  %v912 = vpop.f32.mrb[0].mxu0
  %v913 = vadd.f32 %v721, %v912
  %v914 = vpop.f32.mrb[0].mxu0
  %915 = vdwg.mxu0
  %v917 = vsel %vm63, %v400, 0
  %v920 = vsel %vm63, %v405, 0
  %v923 = vsel %vm63, %v410, 0
  %v926 = vsel %vm63, %v415, 0
  %v929 = vsel %vm63, %v420, 0
  %v932 = vsel %vm63, %v425, 0
  %v935 = vsel %vm63, %v430, 0
  %v938 = vsel %vm63, %v435, 0
  %v941 = vsel %vm63, %v440, 0
  %v944 = vsel %vm63, %v445, 0
  %v947 = vsel %vm63, %v450, 0
  %v950 = vsel %vm63, %v455, 0
  %v953 = vsel %vm63, %v460, 0
  %v956 = vsel %vm63, %v465, 0
  %v959 = vsel %vm63, %v470, 0
  %v962 = vsel %vm63, %v475, 0
  %964 = vmatprep.subr.mxu0 0.0
  %965 = vmatpush1.msra.mxu0 %v494
  %966 = vmatprep.subr.mxu0 0.0
  %967 = vmatpush1.msra.mxu0 %v495
  %968 = vmatprep.subr.mxu0 0.0
  %969 = vmatpush1.msra.mxu0 0.0
  %970 = vmatprep.subr.mxu0 0.0
  %971 = vmatpush1.msra.mxu0 0.0
  %972 = vmatprep.subr.mxu0 0.0
  %973 = vmatpush1.msra.mxu0 0.0
  %974 = vmatprep.subr.mxu0 0.0
  %975 = vmatpush1.msra.mxu0 0.0
  %976 = vmatprep.subr.mxu0 0.0
  %977 = vmatpush1.msra.mxu0 0.0
  %978 = vmatprep.subr.mxu0 0.0
  %979 = vmatpush1.msra.mxu0 0.0
  %980 = vmatprep.subr.mxu0 0.0
  %981 = vmatpush1.msra.mxu0 0.0
  %982 = vmatprep.subr.mxu0 0.0
  %983 = vmatpush1.msra.mxu0 0.0
  %984 = vmatprep.subr.mxu0 0.0
  %985 = vmatpush1.msra.mxu0 0.0
  %986 = vmatprep.subr.mxu0 0.0
  %987 = vmatpush1.msra.mxu0 0.0
  %988 = vmatprep.subr.mxu0 0.0
  %989 = vmatpush1.msra.mxu0 0.0
  %990 = vmatprep.subr.mxu0 0.0
  %991 = vmatpush1.msra.mxu0 0.0
  %992 = vmatprep.subr.mxu0 0.0
  %993 = vmatpush1.msra.mxu0 0.0
  %994 = vmatprep.subr.mxu0 0.0
  %995 = vmatpush1.msra.mxu0 0.0
  %996 = vmatprep.subr.mxu0 0.0
  %997 = vmatpush1.msra.mxu0 0.0
  %998 = vmatprep.subr.mxu0 0.0
  %999 = vmatpush1.msra.mxu0 0.0
  %1000 = vmatprep.subr.mxu0 0.0
  %1001 = vmatpush1.msra.mxu0 0.0
  %1002 = vmatprep.subr.mxu0 0.0
  %1003 = vmatpush1.msra.mxu0 0.0
  %1004 = vmatprep.subr.mxu0 0.0
  %1005 = vmatpush1.msra.mxu0 0.0
  %1006 = vmatprep.subr.mxu0 0.0
  %1007 = vmatpush1.msra.mxu0 0.0
  %1008 = vmatprep.subr.mxu0 0.0
  %1009 = vmatpush1.msra.mxu0 0.0
  %1010 = vmatprep.subr.mxu0 0.0
  %1011 = vmatpush1.msra.mxu0 0.0
  %1012 = vmatprep.subr.mxu0 0.0
  %1013 = vmatpush1.msra.mxu0 0.0
  %1014 = vmatprep.subr.mxu0 0.0
  %1015 = vmatpush1.msra.mxu0 0.0
  %1016 = vmatprep.subr.mxu0 0.0
  %1017 = vmatpush1.msra.mxu0 0.0
  %1018 = vmatprep.subr.mxu0 0.0
  %1019 = vmatpush1.msra.mxu0 0.0
  %1020 = vmatprep.subr.mxu0 0.0
  %1021 = vmatpush1.msra.mxu0 0.0
  %1022 = vmatprep.subr.mxu0 0.0
  %1023 = vmatpush1.msra.mxu0 0.0
  %1024 = vmatprep.subr.mxu0 0.0
  %1025 = vmatpush1.msra.mxu0 0.0
  %1026 = vmatprep.subr.mxu0 0.0
  %1027 = vmatpush1.msra.mxu0 0.0
  %1028 = vmatprep.mubr.f32.mxu0 0.0
  %1029 = vmatmul.mubr.f32.gmra.mrb[0].mxu0 %v917
  %v1030 = vpop.f32.mrb[0].mxu0
  %v1031 = vadd.f32 %v501, %v1030
  %v1032 = vpop.f32.mrb[0].mxu0
  %1033 = vmatprep.mubr.f32.mxu0 0.0
  %1034 = vmatmul.mubr.f32.gmra.mrb[0].mxu0 %v920
  %v1035 = vpop.f32.mrb[0].mxu0
  %v1036 = vadd.f32 %v501, %v1035
  %v1037 = vpop.f32.mrb[0].mxu0
  %1038 = vmatprep.mubr.f32.mxu0 0.0
  %1039 = vmatmul.mubr.f32.gmra.mrb[0].mxu0 %v923
  %v1040 = vpop.f32.mrb[0].mxu0
  %v1041 = vadd.f32 %v501, %v1040
  %v1042 = vpop.f32.mrb[0].mxu0
  %1043 = vmatprep.mubr.f32.mxu0 0.0
  %1044 = vmatmul.mubr.f32.gmra.mrb[0].mxu0 %v926
  %v1045 = vpop.f32.mrb[0].mxu0
  %v1046 = vadd.f32 %v501, %v1045
  %v1047 = vpop.f32.mrb[0].mxu0
  %1048 = vmatprep.mubr.f32.mxu0 0.0
  %1049 = vmatmul.mubr.f32.gmra.mrb[0].mxu0 %v929
  %v1050 = vpop.f32.mrb[0].mxu0
  %v1051 = vadd.f32 %v501, %v1050
  %v1052 = vpop.f32.mrb[0].mxu0
  %1053 = vmatprep.mubr.f32.mxu0 0.0
  %1054 = vmatmul.mubr.f32.gmra.mrb[0].mxu0 %v932
  %v1055 = vpop.f32.mrb[0].mxu0
  %v1056 = vadd.f32 %v501, %v1055
  %v1057 = vpop.f32.mrb[0].mxu0
  %1058 = vmatprep.mubr.f32.mxu0 0.0
  %1059 = vmatmul.mubr.f32.gmra.mrb[0].mxu0 %v935
  %v1060 = vpop.f32.mrb[0].mxu0
  %v1061 = vadd.f32 %v501, %v1060
  %v1062 = vpop.f32.mrb[0].mxu0
  %1063 = vmatprep.mubr.f32.mxu0 0.0
  %1064 = vmatmul.mubr.f32.gmra.mrb[0].mxu0 %v938
  %v1065 = vpop.f32.mrb[0].mxu0
  %v1066 = vadd.f32 %v501, %v1065
  %v1067 = vpop.f32.mrb[0].mxu0
  %1068 = vmatprep.mubr.f32.mxu0 0.0
  %1069 = vmatmul.mubr.f32.gmra.mrb[0].mxu0 %v941
  %v1070 = vpop.f32.mrb[0].mxu0
  %v1071 = vadd.f32 %v501, %v1070
  %v1072 = vpop.f32.mrb[0].mxu0
  %1073 = vmatprep.mubr.f32.mxu0 0.0
  %1074 = vmatmul.mubr.f32.gmra.mrb[0].mxu0 %v944
  %v1075 = vpop.f32.mrb[0].mxu0
  %v1076 = vadd.f32 %v501, %v1075
  %v1077 = vpop.f32.mrb[0].mxu0
  %1078 = vmatprep.mubr.f32.mxu0 0.0
  %1079 = vmatmul.mubr.f32.gmra.mrb[0].mxu0 %v947
  %v1080 = vpop.f32.mrb[0].mxu0
  %v1081 = vadd.f32 %v501, %v1080
  %v1082 = vpop.f32.mrb[0].mxu0
  %1083 = vmatprep.mubr.f32.mxu0 0.0
  %1084 = vmatmul.mubr.f32.gmra.mrb[0].mxu0 %v950
  %v1085 = vpop.f32.mrb[0].mxu0
  %v1086 = vadd.f32 %v501, %v1085
  %v1087 = vpop.f32.mrb[0].mxu0
  %1088 = vmatprep.mubr.f32.mxu0 0.0
  %1089 = vmatmul.mubr.f32.gmra.mrb[0].mxu0 %v953
  %v1090 = vpop.f32.mrb[0].mxu0
  %v1091 = vadd.f32 %v501, %v1090
  %v1092 = vpop.f32.mrb[0].mxu0
  %1093 = vmatprep.mubr.f32.mxu0 0.0
  %1094 = vmatmul.mubr.f32.gmra.mrb[0].mxu0 %v956
  %v1095 = vpop.f32.mrb[0].mxu0
  %v1096 = vadd.f32 %v501, %v1095
  %v1097 = vpop.f32.mrb[0].mxu0
  %1098 = vmatprep.mubr.f32.mxu0 0.0
  %1099 = vmatmul.mubr.f32.gmra.mrb[0].mxu0 %v959
  %v1100 = vpop.f32.mrb[0].mxu0
  %v1101 = vadd.f32 %v501, %v1100
  %v1102 = vpop.f32.mrb[0].mxu0
  %1103 = vmatprep.mubr.f32.mxu0 0.0
  %1104 = vmatmul.mubr.f32.gmra.mrb[0].mxu0 %v962
  %v1105 = vpop.f32.mrb[0].mxu0
  %v1106 = vadd.f32 %v501, %v1105
  %v1107 = vpop.f32.mrb[0].mxu0
  %1108 = vdwg.mxu0
  %v1109 = vmax.f32 %v1031, 0.0
  %v1110 = vmax.f32 %v1036, 0.0
  %v1111 = vmax.f32 %v1041, 0.0
  %v1112 = vmax.f32 %v1046, 0.0
  %v1113 = vmax.f32 %v1051, 0.0
  %v1114 = vmax.f32 %v1056, 0.0
  %v1115 = vmax.f32 %v1061, 0.0
  %v1116 = vmax.f32 %v1066, 0.0
  %v1117 = vmax.f32 %v1071, 0.0
  %v1118 = vmax.f32 %v1076, 0.0
  %v1119 = vmax.f32 %v1081, 0.0
  %v1120 = vmax.f32 %v1086, 0.0
  %v1121 = vmax.f32 %v1091, 0.0
  %v1122 = vmax.f32 %v1096, 0.0
  %v1123 = vmax.f32 %v1101, 0.0
  %v1124 = vmax.f32 %v1106, 0.0
  %v1126 = vsel %vm284, %v1109, 0
  %v1129 = vsel %vm284, %v1110, 0
  %v1132 = vsel %vm284, %v1111, 0
  %v1135 = vsel %vm284, %v1112, 0
  %v1138 = vsel %vm284, %v1113, 0
  %v1141 = vsel %vm284, %v1114, 0
  %v1144 = vsel %vm284, %v1115, 0
  %v1147 = vsel %vm284, %v1116, 0
  %v1150 = vsel %vm284, %v1117, 0
  %v1153 = vsel %vm284, %v1118, 0
  %v1156 = vsel %vm284, %v1119, 0
  %v1159 = vsel %vm284, %v1120, 0
  %v1162 = vsel %vm284, %v1121, 0
  %v1165 = vsel %vm284, %v1122, 0
  %v1168 = vsel %vm284, %v1123, 0
  %v1171 = vsel %vm284, %v1124, 0
  %1173 = vmatprep.subr.mxu0 0.0
  %1174 = vmatpush1.msra.mxu0 %v712
  %1175 = vmatprep.subr.mxu0 0.0
  %1176 = vmatpush1.msra.mxu0 %v713
  %1177 = vmatprep.subr.mxu0 0.0
  %1178 = vmatpush1.msra.mxu0 %v714
  %1179 = vmatprep.subr.mxu0 0.0
  %1180 = vmatpush1.msra.mxu0 %v715
  %1181 = vmatprep.subr.mxu0 0.0
  %1182 = vmatpush1.msra.mxu0 0.0
  %1183 = vmatprep.subr.mxu0 0.0
  %1184 = vmatpush1.msra.mxu0 0.0
  %1185 = vmatprep.subr.mxu0 0.0
  %1186 = vmatpush1.msra.mxu0 0.0
  %1187 = vmatprep.subr.mxu0 0.0
  %1188 = vmatpush1.msra.mxu0 0.0
  %1189 = vmatprep.subr.mxu0 0.0
  %1190 = vmatpush1.msra.mxu0 0.0
  %1191 = vmatprep.subr.mxu0 0.0
  %1192 = vmatpush1.msra.mxu0 0.0
  %1193 = vmatprep.subr.mxu0 0.0
  %1194 = vmatpush1.msra.mxu0 0.0
  %1195 = vmatprep.subr.mxu0 0.0
  %1196 = vmatpush1.msra.mxu0 0.0
  %1197 = vmatprep.subr.mxu0 0.0
  %1198 = vmatpush1.msra.mxu0 0.0
  %1199 = vmatprep.subr.mxu0 0.0
  %1200 = vmatpush1.msra.mxu0 0.0
  %1201 = vmatprep.subr.mxu0 0.0
  %1202 = vmatpush1.msra.mxu0 0.0
  %1203 = vmatprep.subr.mxu0 0.0
  %1204 = vmatpush1.msra.mxu0 0.0
  %1205 = vmatprep.subr.mxu0 0.0
  %1206 = vmatpush1.msra.mxu0 0.0
  %1207 = vmatprep.subr.mxu0 0.0
  %1208 = vmatpush1.msra.mxu0 0.0
  %1209 = vmatprep.subr.mxu0 0.0
  %1210 = vmatpush1.msra.mxu0 0.0
  %1211 = vmatprep.subr.mxu0 0.0
  %1212 = vmatpush1.msra.mxu0 0.0
  %1213 = vmatprep.subr.mxu0 0.0
  %1214 = vmatpush1.msra.mxu0 0.0
  %1215 = vmatprep.subr.mxu0 0.0
  %1216 = vmatpush1.msra.mxu0 0.0
  %1217 = vmatprep.subr.mxu0 0.0
  %1218 = vmatpush1.msra.mxu0 0.0
  %1219 = vmatprep.subr.mxu0 0.0
  %1220 = vmatpush1.msra.mxu0 0.0
  %1221 = vmatprep.subr.mxu0 0.0
  %1222 = vmatpush1.msra.mxu0 0.0
  %1223 = vmatprep.subr.mxu0 0.0
  %1224 = vmatpush1.msra.mxu0 0.0
  %1225 = vmatprep.subr.mxu0 0.0
  %1226 = vmatpush1.msra.mxu0 0.0
  %1227 = vmatprep.subr.mxu0 0.0
  %1228 = vmatpush1.msra.mxu0 0.0
  %1229 = vmatprep.subr.mxu0 0.0
  %1230 = vmatpush1.msra.mxu0 0.0
  %1231 = vmatprep.subr.mxu0 0.0
  %1232 = vmatpush1.msra.mxu0 0.0
  %1233 = vmatprep.subr.mxu0 0.0
  %1234 = vmatpush1.msra.mxu0 0.0
  %1235 = vmatprep.subr.mxu0 0.0
  %1236 = vmatpush1.msra.mxu0 0.0
  %1237 = vmatprep.mubr.f32.mxu0 0.0
  %1238 = vmatmul.mubr.f32.gmra.mrb[0].mxu0 %v1126
  %v1239 = vpop.f32.mrb[0].mxu0
  %v1240 = vadd.f32 %v721, %v1239
  %v1241 = vpop.f32.mrb[0].mxu0
  %1242 = vmatprep.mubr.f32.mxu0 0.0
  %1243 = vmatmul.mubr.f32.gmra.mrb[0].mxu0 %v1129
  %v1244 = vpop.f32.mrb[0].mxu0
  %v1245 = vadd.f32 %v721, %v1244
  %v1246 = vpop.f32.mrb[0].mxu0
  %1247 = vmatprep.mubr.f32.mxu0 0.0
  %1248 = vmatmul.mubr.f32.gmra.mrb[0].mxu0 %v1132
  %v1249 = vpop.f32.mrb[0].mxu0
  %v1250 = vadd.f32 %v721, %v1249
  %v1251 = vpop.f32.mrb[0].mxu0
  %1252 = vmatprep.mubr.f32.mxu0 0.0
  %1253 = vmatmul.mubr.f32.gmra.mrb[0].mxu0 %v1135
  %v1254 = vpop.f32.mrb[0].mxu0
  %v1255 = vadd.f32 %v721, %v1254
  %v1256 = vpop.f32.mrb[0].mxu0
  %1257 = vmatprep.mubr.f32.mxu0 0.0
  %1258 = vmatmul.mubr.f32.gmra.mrb[0].mxu0 %v1138
  %v1259 = vpop.f32.mrb[0].mxu0
  %v1260 = vadd.f32 %v721, %v1259
  %v1261 = vpop.f32.mrb[0].mxu0
  %1262 = vmatprep.mubr.f32.mxu0 0.0
  %1263 = vmatmul.mubr.f32.gmra.mrb[0].mxu0 %v1141
  %v1264 = vpop.f32.mrb[0].mxu0
  %v1265 = vadd.f32 %v721, %v1264
  %v1266 = vpop.f32.mrb[0].mxu0
  %1267 = vmatprep.mubr.f32.mxu0 0.0
  %1268 = vmatmul.mubr.f32.gmra.mrb[0].mxu0 %v1144
  %v1269 = vpop.f32.mrb[0].mxu0
  %v1270 = vadd.f32 %v721, %v1269
  %v1271 = vpop.f32.mrb[0].mxu0
  %1272 = vmatprep.mubr.f32.mxu0 0.0
  %1273 = vmatmul.mubr.f32.gmra.mrb[0].mxu0 %v1147
  %v1274 = vpop.f32.mrb[0].mxu0
  %v1275 = vadd.f32 %v721, %v1274
  %v1276 = vpop.f32.mrb[0].mxu0
  %1277 = vmatprep.mubr.f32.mxu0 0.0
  %1278 = vmatmul.mubr.f32.gmra.mrb[0].mxu0 %v1150
  %v1279 = vpop.f32.mrb[0].mxu0
  %v1280 = vadd.f32 %v721, %v1279
  %v1281 = vpop.f32.mrb[0].mxu0
  %1282 = vmatprep.mubr.f32.mxu0 0.0
  %1283 = vmatmul.mubr.f32.gmra.mrb[0].mxu0 %v1153
  %v1284 = vpop.f32.mrb[0].mxu0
  %v1285 = vadd.f32 %v721, %v1284
  %v1286 = vpop.f32.mrb[0].mxu0
  %1287 = vmatprep.mubr.f32.mxu0 0.0
  %1288 = vmatmul.mubr.f32.gmra.mrb[0].mxu0 %v1156
  %v1289 = vpop.f32.mrb[0].mxu0
  %v1290 = vadd.f32 %v721, %v1289
  %v1291 = vpop.f32.mrb[0].mxu0
  %1292 = vmatprep.mubr.f32.mxu0 0.0
  %1293 = vmatmul.mubr.f32.gmra.mrb[0].mxu0 %v1159
  %v1294 = vpop.f32.mrb[0].mxu0
  %v1295 = vadd.f32 %v721, %v1294
  %v1296 = vpop.f32.mrb[0].mxu0
  %1297 = vmatprep.mubr.f32.mxu0 0.0
  %1298 = vmatmul.mubr.f32.gmra.mrb[0].mxu0 %v1162
  %v1299 = vpop.f32.mrb[0].mxu0
  %v1300 = vadd.f32 %v721, %v1299
  %v1301 = vpop.f32.mrb[0].mxu0
  %1302 = vmatprep.mubr.f32.mxu0 0.0
  %1303 = vmatmul.mubr.f32.gmra.mrb[0].mxu0 %v1165
  %v1304 = vpop.f32.mrb[0].mxu0
  %v1305 = vadd.f32 %v721, %v1304
  %v1306 = vpop.f32.mrb[0].mxu0
  %1307 = vmatprep.mubr.f32.mxu0 0.0
  %1308 = vmatmul.mubr.f32.gmra.mrb[0].mxu0 %v1168
  %v1309 = vpop.f32.mrb[0].mxu0
  %v1310 = vadd.f32 %v721, %v1309
  %v1311 = vpop.f32.mrb[0].mxu0
  %1312 = vmatprep.mubr.f32.mxu0 0.0
  %1313 = vmatmul.mubr.f32.gmra.mrb[0].mxu0 %v1171
  %v1314 = vpop.f32.mrb[0].mxu0
  %v1315 = vadd.f32 %v721, %v1314
  %v1316 = vpop.f32.mrb[0].mxu0
  %1317 = vdwg.mxu0
  %1318 = vst.msk [vmem:[%s10] sm:$0xff] %vm63, %v400
  %1319 = vst.msk [vmem:[%s10 + $0x8] sm:$0xff] %vm63, %v405
  %1320 = vst.msk [vmem:[%s10 + $0x10] sm:$0xff] %vm63, %v410
  %1321 = vst.msk [vmem:[%s10 + $0x18] sm:$0xff] %vm63, %v415
  %1322 = vst.msk [vmem:[%s10 + $0x20] sm:$0xff] %vm63, %v420
  %1323 = vst.msk [vmem:[%s10 + $0x28] sm:$0xff] %vm63, %v425
  %1324 = vst.msk [vmem:[%s10 + $0x30] sm:$0xff] %vm63, %v430
  %1325 = vst.msk [vmem:[%s10 + $0x38] sm:$0xff] %vm63, %v435
  %1326 = vst.msk [vmem:[%s10 + $0x40] sm:$0xff] %vm63, %v440
  %1327 = vst.msk [vmem:[%s10 + $0x48] sm:$0xff] %vm63, %v445
  %1328 = vst.msk [vmem:[%s10 + $0x50] sm:$0xff] %vm63, %v450
  %1329 = vst.msk [vmem:[%s10 + $0x58] sm:$0xff] %vm63, %v455
  %1330 = vst.msk [vmem:[%s10 + $0x60] sm:$0xff] %vm63, %v460
  %1331 = vst.msk [vmem:[%s10 + $0x68] sm:$0xff] %vm63, %v465
  %1332 = vst.msk [vmem:[%s10 + $0x70] sm:$0xff] %vm63, %v470
  %1333 = vst.msk [vmem:[%s10 + $0x78] sm:$0xff] %vm63, %v475
  %1334 = vst.msk [vmem:[%s11] sm:$0xff] %vm284, %v838
  %1335 = vst.msk [vmem:[%s11 + $0x8] sm:$0xff] %vm284, %v843
  %1336 = vst.msk [vmem:[%s11 + $0x10] sm:$0xff] %vm284, %v848
  %1337 = vst.msk [vmem:[%s11 + $0x18] sm:$0xff] %vm284, %v853
  %1338 = vst.msk [vmem:[%s11 + $0x20] sm:$0xff] %vm284, %v858
  %1339 = vst.msk [vmem:[%s11 + $0x28] sm:$0xff] %vm284, %v863
  %1340 = vst.msk [vmem:[%s11 + $0x30] sm:$0xff] %vm284, %v868
  %1341 = vst.msk [vmem:[%s11 + $0x38] sm:$0xff] %vm284, %v873
  %1342 = vst.msk [vmem:[%s11 + $0x40] sm:$0xff] %vm284, %v878
  %1343 = vst.msk [vmem:[%s11 + $0x48] sm:$0xff] %vm284, %v883
  %1344 = vst.msk [vmem:[%s11 + $0x50] sm:$0xff] %vm284, %v888
  %1345 = vst.msk [vmem:[%s11 + $0x58] sm:$0xff] %vm284, %v893
  %1346 = vst.msk [vmem:[%s11 + $0x60] sm:$0xff] %vm284, %v898
  %1347 = vst.msk [vmem:[%s11 + $0x68] sm:$0xff] %vm284, %v903
  %1348 = vst.msk [vmem:[%s11 + $0x70] sm:$0xff] %vm284, %v908
  %1349 = vst.msk [vmem:[%s11 + $0x78] sm:$0xff] %vm284, %v913
  %1350 = vst.msk [vmem:[%s12] sm:$0xff] %vm284, %v1240
  %1351 = vst.msk [vmem:[%s12 + $0x8] sm:$0xff] %vm284, %v1245
  %1352 = vst.msk [vmem:[%s12 + $0x10] sm:$0xff] %vm284, %v1250
  %1353 = vst.msk [vmem:[%s12 + $0x18] sm:$0xff] %vm284, %v1255
  %1354 = vst.msk [vmem:[%s12 + $0x20] sm:$0xff] %vm284, %v1260
  %1355 = vst.msk [vmem:[%s12 + $0x28] sm:$0xff] %vm284, %v1265
  %1356 = vst.msk [vmem:[%s12 + $0x30] sm:$0xff] %vm284, %v1270
  %1357 = vst.msk [vmem:[%s12 + $0x38] sm:$0xff] %vm284, %v1275
  %1358 = vst.msk [vmem:[%s12 + $0x40] sm:$0xff] %vm284, %v1280
  %1359 = vst.msk [vmem:[%s12 + $0x48] sm:$0xff] %vm284, %v1285
  %1360 = vst.msk [vmem:[%s12 + $0x50] sm:$0xff] %vm284, %v1290
  %1361 = vst.msk [vmem:[%s12 + $0x58] sm:$0xff] %vm284, %v1295
  %1362 = vst.msk [vmem:[%s12 + $0x60] sm:$0xff] %vm284, %v1300
  %1363 = vst.msk [vmem:[%s12 + $0x68] sm:$0xff] %vm284, %v1305
  %1364 = vst.msk [vmem:[%s12 + $0x70] sm:$0xff] %vm284, %v1310
  %1365 = vst.msk [vmem:[%s12 + $0x78] sm:$0xff] %vm284, %v1315
  // Predicated region
  $region42: #{tpu_custom_call.1} parent=0 // pred_check
    _
  $region43: #{tpu_custom_call.1} parent=0 // pred_check_branch
    %1367 = sbr.rel (0) target = $region45
  $region44: #{tpu_custom_call.1} parent=0 // pred_region
    _
  $region45: #{tpu_custom_call.1} parent=0 // pred_fallthru
    _
  // Predicated region
  $region46: #{tpu_custom_call.1} parent=0 // pred_check
    _
  $region47: #{tpu_custom_call.1} parent=0 // pred_check_branch
    %1369 = sbr.rel (0) target = $region49
  $region48: #{tpu_custom_call.1} parent=0 // pred_region
    _
  $region49: #{tpu_custom_call.1} parent=0 // pred_fallthru
    _
  // Predicated region
  $region50: #{tpu_custom_call.1} parent=0 // pred_check
    _
  $region51: #{tpu_custom_call.1} parent=0 // pred_check_branch
    %1371 = sbr.rel (0) target = $region53
  $region52: #{tpu_custom_call.1} parent=0 // pred_region
    _
  $region53: #{tpu_custom_call.1} parent=0 // pred_fallthru
    _
  // Predicated region
  $region54: #{tpu_custom_call.1} parent=0 // pred_check
    _
  $region55: #{tpu_custom_call.1} parent=0 // pred_check_branch
    %1373 = sbr.rel (0) target = $region57
  $region56: #{tpu_custom_call.1} parent=0 // pred_region
    _
  $region57: #{tpu_custom_call.1} parent=0 // pred_fallthru
    _
  // Predicated region
  $region58: #{tpu_custom_call.1} parent=0 // pred_check
    _
  $region59: #{tpu_custom_call.1} parent=0 // pred_check_branch
    %1375 = sbr.rel (0) target = $region61
  $region60: #{tpu_custom_call.1} parent=0 // pred_region
    _
  $region61: #{tpu_custom_call.1} parent=0 // pred_fallthru
    _
  // Predicated region
  $region62: #{tpu_custom_call.1} parent=0 // pred_check
    _
  $region63: #{tpu_custom_call.1} parent=0 // pred_check_branch
    %1377 = sbr.rel (0) target = $region65
  $region64: #{tpu_custom_call.1} parent=0 // pred_region
    _
  $region65: #{tpu_custom_call.1} parent=0 // pred_fallthru
    _

</llo_original>
